<compile_context>
chip_gen: v6e
topology: v6e:2x2x1
jax: 0.10.0
libtpu: 0.0.40
codegen_flags: <defaults>
</compile_context>

<pallas_src>
import functools

import jax
import jax.numpy as jnp
from jax.experimental import pallas as pl
from jax.experimental.pallas import tpu as pltpu


# ----------------------------------------------------------------------------
# Fused STC-layer kernel (one grid step = one block of batch elements)
# ----------------------------------------------------------------------------
def stc_kernel(xcol_ref, w1s_ref, shift_ref, w2h_ref, w2z_ref, b2_ref, o_ref,
               *, C, T, neighbors):
    """
    xcol_ref: (Bblk, 3L, C*T)  wrapper-built im2col input (row = k*L + l), lane-dense cols
    w1s_ref:  (F, 3L)          temporal conv weight with BN scale pre-folded
    shift_ref:(F, 1)           folded BatchNorm shift (conv bias folded through BN), f32
    w2h_ref:  (F, F)           1x1 comb-conv weight acting on h
    w2z_ref:  (F, F)           1x1 comb-conv weight acting on z
    b2_ref:   (F, 1)           comb-conv bias, f32
    o_ref:    (Bblk, C, F, T)  output, torch layout (no post-kernel transpose)
    """
    w1s = w1s_ref[...]
    shift = shift_ref[...]
    w2h = w2h_ref[...]
    w2z = w2z_ref[...]
    b2 = b2_ref[...]

    bblk = xcol_ref.shape[0]
    for bb in range(bblk):                                      # static unroll, bblk is small
        # temporal conv (k=3, pad=1) + eval-mode BN: one MXU matmul + additive shift
        h = jnp.dot(w1s, xcol_ref[bb],
                    preferred_element_type=jnp.float32) + shift         # (F, C*T) f32

        # spatial max over (static) neighbor channel lists -- lane-aligned T slices, no gather
        z_cols = []
        for cc in range(C):
            nb = neighbors[cc]
            m = h[:, nb[0] * T:(nb[0] + 1) * T]
            for n in nb[1:]:
                m = jnp.maximum(m, h[:, n * T:(n + 1) * T])
            z_cols.append(m)                                            # (F, T)
        z = jnp.concatenate(z_cols, axis=1)                             # (F, C*T)

        # LeakyReLU(0.01) then split 1x1 comb conv (no hz concat), LeakyReLU again
        hl = jnp.where(h > 0, h, 0.01 * h).astype(w2h.dtype)
        zl = jnp.where(z > 0, z, 0.01 * z).astype(w2z.dtype)
        out = (jnp.dot(w2h, hl, preferred_element_type=jnp.float32)
               + jnp.dot(w2z, zl, preferred_element_type=jnp.float32) + b2)
        out = jnp.where(out > 0, out, 0.01 * out).astype(o_ref.dtype)

        # write directly in torch layout: one (F, T) lane-aligned tile per graph channel
        for cc in range(C):
            o_ref[bb, cc] = out[:, cc * T:(cc + 1) * T]


# ----------------------------------------------------------------------------
# Wrapper: torch-layout in (B, C, L, T), torch-layout out (B, C, F, T)
# ----------------------------------------------------------------------------
def _im2col(x, dtype):
    """(B, C, L, T) -> (B, 3L, C*T) with row index k*L + l (tap-major), halo folded in."""
    B, C, L, T = x.shape
    xd = x.astype(dtype)
    xm1 = jnp.pad(xd[..., :-1], ((0, 0), (0, 0), (0, 0), (1, 0)))   # tap k=0: x[t-1]
    xp1 = jnp.pad(xd[..., 1:], ((0, 0), (0, 0), (0, 0), (0, 1)))    # tap k=2: x[t+1]
    taps = jnp.stack([xm1, xd, xp1], axis=2)                        # (B, C, 3, L, T)
    return taps.transpose(0, 2, 3, 1, 4).reshape(B, 3 * L, C * T)   # (B, 3L, C*T)


def _pick_bblk(B, max_bblk=8):
    """Largest divisor of B <= max_bblk that still leaves >= 2 grid steps
    (so ("parallel",) can spread work across both TensorCores on v7x)."""
    best = 1
    for cand in range(1, min(B, max_bblk) + 1):
        if B % cand == 0 and (B // cand) >= min(2, B):
            best = cand
    return best


def stc_layer_forward(x, params, neighbors, *, dtype=jnp.float32, max_bblk=8):
    B, C, L, T = x.shape
    F = params['w2'].shape[0]
    nbrs = tuple(tuple(int(n) for n in neighbors[cc]) for cc in range(C))

    # One-time weight prep in the wrapper (cheap XLA ops):
    w1s = (params['scale'] * params['w1']).astype(dtype)     # BN scale folded into conv weight
    shift = params['shift'].astype(jnp.float32)
    w2h = params['w2'][:, :F].astype(dtype)                   # split 1x1 comb conv -> no hz concat
    w2z = params['w2'][:, F:].astype(dtype)
    b2 = params['b2'].astype(jnp.float32)

    xcol = _im2col(x, dtype)                                  # (B, 3L, C*T), halo folded in

    bblk = _pick_bblk(B, max_bblk)
    grid = (B // bblk,)

    kern = functools.partial(stc_kernel, C=C, T=T, neighbors=nbrs)
    out = pl.pallas_call(
        kern,
        out_shape=jax.ShapeDtypeStruct((B, C, F, T), jnp.float32),
        grid=grid,
        in_specs=[
            pl.BlockSpec((bblk, 3 * L, C * T), lambda b: (b, 0, 0)),
            pl.BlockSpec((F, 3 * L), lambda b: (0, 0)),
            pl.BlockSpec((F, 1), lambda b: (0, 0)),
            pl.BlockSpec((F, F), lambda b: (0, 0)),
            pl.BlockSpec((F, F), lambda b: (0, 0)),
            pl.BlockSpec((F, 1), lambda b: (0, 0)),
        ],
        out_specs=pl.BlockSpec((bblk, C, F, T), lambda b: (b, 0, 0, 0)),
        compiler_params=pltpu.CompilerParams(
            dimension_semantics=("parallel",),
        ),
    )(xcol, w1s, shift, w2h, w2z, b2)
    return out                                                # already (B, C, F, T) torch layout


# ----------------------------------------------------------------------------
# Deterministic synthetic parameters (shapes from STC_layer.__init__)
# ----------------------------------------------------------------------------
def init_params(key, input_features, output_features):
    L, F = input_features, output_features
    k1, k2, k3, k4, k5, k6, k7, k8 = jax.random.split(key, 8)
    w_taps = 0.2 * jax.random.normal(k1, (3, F, L), jnp.float32)   # Conv1d weight tap slices
    w1 = jnp.concatenate([w_taps[k] for k in range(3)], axis=1)    # (F, 3L), column = k*L + l
    b1 = 0.1 * jax.random.normal(k2, (F, 1), jnp.float32)
    gamma = jax.random.uniform(k3, (F, 1), jnp.float32, minval=0.5, maxval=1.5)
    beta = 0.1 * jax.random.normal(k4, (F, 1), jnp.float32)
    r_mean = 0.1 * jax.random.normal(k5, (F, 1), jnp.float32)
    r_var = jax.random.uniform(k6, (F, 1), jnp.float32, minval=0.5, maxval=1.5)
    # TODO(synk): BatchNorm1d is implemented in eval mode (running stats folded into scale/shift);
    # training-mode batch statistics are not computed in the kernel.
    scale = gamma / jnp.sqrt(r_var + 1e-5)
    shift = beta - r_mean * scale + b1 * scale                     # conv bias folded through BN
    w2 = 0.2 * jax.random.normal(k7, (F, 2 * F), jnp.float32)      # 1x1 comb conv
    b2 = 0.1 * jax.random.normal(k8, (F, 1), jnp.float32)
    return dict(w1=w1, scale=scale, shift=shift, w2=w2, b2=b2)


# ----------------------------------------------------------------------------
# Pure-JAX reference (same eval-mode semantics) for a correctness check
# ----------------------------------------------------------------------------
def stc_layer_ref(x, params, neighbors):
    B, C, L, T = x.shape
    w1, w2 = params['w1'], params['w2']
    F = w2.shape[0]
    hp = jax.lax.Precision.HIGHEST
    xpad = jnp.pad(x.astype(jnp.float32), ((0, 0), (0, 0), (0, 0), (1, 1)))
    h = jnp.zeros((B, C, F, T), jnp.float32)
    for k in range(3):
        wk = w1[:, k * L:(k + 1) * L]                      # (F, L)
        xk = xpad[..., k:k + T]                            # (B, C, L, T)
        h = h + jnp.einsum('fl,bclt->bcft', wk, xk, precision=hp)
    h = h * params['scale'][None, None] + params['shift'][None, None]
    z = jnp.stack([jnp.max(h[:, list(neighbors[cc])], axis=1) for cc in range(C)], axis=1)
    hz = jnp.concatenate([h, z], axis=2)                   # (B, C, 2F, T)
    hz = jnp.where(hz > 0, hz, 0.01 * hz)
    out = jnp.einsum('fg,bcgt->bcft', w2, hz, precision=hp) + params['b2'][None, None]
    return jnp.where(out > 0, out, 0.01 * out)


if __name__ == "__main__":
    key = jax.random.PRNGKey(0)
    kx, kp = jax.random.split(key)

    # Small shapes consistent with the module: x is (B, C, L, T) with C graph channels,
    # L = input_features (conv channels), T time steps (lane axis inside the kernel, T=128).
    B, C, L, T = 2, 8, 16, 128
    F = 32                                                   # output_features
    neighbors = tuple(tuple(sorted({(cc - 1) % C, cc, (cc + 1) % C})) for cc in range(C))

    x = jax.random.normal(kx, (B, C, L, T), jnp.float32)
    params = init_params(kp, input_features=L, output_features=F)

    # f32 path (default) -- strict check against the pure-JAX reference.
    out = stc_layer_forward(x, params, neighbors)
    out = jax.block_until_ready(out)
    assert out.shape == (B, C, F, T) and out.dtype == jnp.float32

    ref = stc_layer_ref(x, params, neighbors)
    max_err = float(jnp.max(jnp.abs(out - ref)))
    assert jnp.allclose(out, ref, atol=2e-3, rtol=2e-3), max_err

    # bf16 activations/weights (recommended for v6e/v7x); f32 accumulate + f32 elementwise inside.
    out_bf16 = stc_layer_forward(x, params, neighbors, dtype=jnp.bfloat16)
    out_bf16 = jax.block_until_ready(out_bf16)
    assert out_bf16.shape == (B, C, F, T) and bool(jnp.all(jnp.isfinite(out_bf16)))

    print("KERNEL_OK")
</pallas_src>

<mosaic_0001>
module attributes {stable_mosaic.version = 11 : i64} {
  func.func @stc_kernel(%arg0: i32, %arg1: memref<1x48x1024xf32, #tpu.memory_space<vmem>>, %arg2: memref<32x48xf32, #tpu.memory_space<vmem>>, %arg3: memref<32x1xf32, #tpu.memory_space<vmem>>, %arg4: memref<32x32xf32, #tpu.memory_space<vmem>>, %arg5: memref<32x32xf32, #tpu.memory_space<vmem>>, %arg6: memref<32x1xf32, #tpu.memory_space<vmem>>, %arg7: memref<1x8x32x128xf32, #tpu.memory_space<vmem>>) attributes {dimension_semantics = [#tpu.dimension_semantics<parallel>], iteration_bounds = array<i64: 2>, scalar_prefetch = 0 : i64, scratch_operands = 0 : i64, tpu.core_type = #tpu.core_type<tc>, window_params = [{transform_indices = @transform_0, window_bounds = array<i64: 1, 48, 1024>}, {pipeline_mode = #tpu.pipeline_mode<synchronous>, transform_indices = @transform_1, window_bounds = array<i64: 32, 48>}, {pipeline_mode = #tpu.pipeline_mode<synchronous>, transform_indices = @transform_2, window_bounds = array<i64: 32, 1>}, {pipeline_mode = #tpu.pipeline_mode<synchronous>, transform_indices = @transform_3, window_bounds = array<i64: 32, 32>}, {pipeline_mode = #tpu.pipeline_mode<synchronous>, transform_indices = @transform_4, window_bounds = array<i64: 32, 32>}, {pipeline_mode = #tpu.pipeline_mode<synchronous>, transform_indices = @transform_5, window_bounds = array<i64: 32, 1>}, {transform_indices = @transform_6, window_bounds = array<i64: 1, 8, 32, 128>}]} {
    %c0 = arith.constant 0 : index
    %c0_0 = arith.constant 0 : index
    %0 = vector.load %arg2[%c0, %c0_0] : memref<32x48xf32, #tpu.memory_space<vmem>>, vector<32x48xf32>
    %c0_1 = arith.constant 0 : index
    %c0_2 = arith.constant 0 : index
    %1 = vector.load %arg3[%c0_1, %c0_2] : memref<32x1xf32, #tpu.memory_space<vmem>>, vector<32x1xf32>
    %c0_3 = arith.constant 0 : index
    %c0_4 = arith.constant 0 : index
    %2 = vector.load %arg4[%c0_3, %c0_4] : memref<32x32xf32, #tpu.memory_space<vmem>>, vector<32x32xf32>
    %c0_5 = arith.constant 0 : index
    %c0_6 = arith.constant 0 : index
    %3 = vector.load %arg5[%c0_5, %c0_6] : memref<32x32xf32, #tpu.memory_space<vmem>>, vector<32x32xf32>
    %c0_7 = arith.constant 0 : index
    %c0_8 = arith.constant 0 : index
    %4 = vector.load %arg6[%c0_7, %c0_8] : memref<32x1xf32, #tpu.memory_space<vmem>>, vector<32x1xf32>
    %c0_9 = arith.constant 0 : index
    %c0_10 = arith.constant 0 : index
    %c0_11 = arith.constant 0 : index
    %5 = vector.load %arg1[%c0_9, %c0_10, %c0_11] : memref<1x48x1024xf32, #tpu.memory_space<vmem>>, vector<1x48x1024xf32>
    %6 = vector.shape_cast %5 : vector<1x48x1024xf32> to vector<48x1024xf32>
    %cst = arith.constant dense<0.000000e+00> : vector<32x1024xf32>
    %7 = tpu.matmul %0, %6, %cst {dimension_numbers = #tpu.dot_dimension_numbers<[1], [0], [0], [1], [0, 0, 1, 1], [], []>} : vector<32x48xf32>, vector<48x1024xf32>, vector<32x1024xf32> -> vector<32x1024xf32>
    %8 = vector.broadcast %1 : vector<32x1xf32> to vector<32x1024xf32>
    %9 = arith.addf %7, %8 : vector<32x1024xf32>
    %10 = vector.extract_strided_slice %9 {offsets = [0, 0], sizes = [32, 128], strides = [1, 1]} : vector<32x1024xf32> to vector<32x128xf32>
    %11 = vector.extract_strided_slice %9 {offsets = [0, 128], sizes = [32, 128], strides = [1, 1]} : vector<32x1024xf32> to vector<32x128xf32>
    %12 = arith.maximumf %10, %11 : vector<32x128xf32>
    %13 = vector.extract_strided_slice %9 {offsets = [0, 896], sizes = [32, 128], strides = [1, 1]} : vector<32x1024xf32> to vector<32x128xf32>
    %14 = arith.maximumf %12, %13 : vector<32x128xf32>
    %15 = vector.extract_strided_slice %9 {offsets = [0, 0], sizes = [32, 128], strides = [1, 1]} : vector<32x1024xf32> to vector<32x128xf32>
    %16 = vector.extract_strided_slice %9 {offsets = [0, 128], sizes = [32, 128], strides = [1, 1]} : vector<32x1024xf32> to vector<32x128xf32>
    %17 = arith.maximumf %15, %16 : vector<32x128xf32>
    %18 = vector.extract_strided_slice %9 {offsets = [0, 256], sizes = [32, 128], strides = [1, 1]} : vector<32x1024xf32> to vector<32x128xf32>
    %19 = arith.maximumf %17, %18 : vector<32x128xf32>
    %20 = vector.extract_strided_slice %9 {offsets = [0, 128], sizes = [32, 128], strides = [1, 1]} : vector<32x1024xf32> to vector<32x128xf32>
    %21 = vector.extract_strided_slice %9 {offsets = [0, 256], sizes = [32, 128], strides = [1, 1]} : vector<32x1024xf32> to vector<32x128xf32>
    %22 = arith.maximumf %20, %21 : vector<32x128xf32>
    %23 = vector.extract_strided_slice %9 {offsets = [0, 384], sizes = [32, 128], strides = [1, 1]} : vector<32x1024xf32> to vector<32x128xf32>
    %24 = arith.maximumf %22, %23 : vector<32x128xf32>
    %25 = vector.extract_strided_slice %9 {offsets = [0, 256], sizes = [32, 128], strides = [1, 1]} : vector<32x1024xf32> to vector<32x128xf32>
    %26 = vector.extract_strided_slice %9 {offsets = [0, 384], sizes = [32, 128], strides = [1, 1]} : vector<32x1024xf32> to vector<32x128xf32>
    %27 = arith.maximumf %25, %26 : vector<32x128xf32>
    %28 = vector.extract_strided_slice %9 {offsets = [0, 512], sizes = [32, 128], strides = [1, 1]} : vector<32x1024xf32> to vector<32x128xf32>
    %29 = arith.maximumf %27, %28 : vector<32x128xf32>
    %30 = vector.extract_strided_slice %9 {offsets = [0, 384], sizes = [32, 128], strides = [1, 1]} : vector<32x1024xf32> to vector<32x128xf32>
    %31 = vector.extract_strided_slice %9 {offsets = [0, 512], sizes = [32, 128], strides = [1, 1]} : vector<32x1024xf32> to vector<32x128xf32>
    %32 = arith.maximumf %30, %31 : vector<32x128xf32>
    %33 = vector.extract_strided_slice %9 {offsets = [0, 640], sizes = [32, 128], strides = [1, 1]} : vector<32x1024xf32> to vector<32x128xf32>
    %34 = arith.maximumf %32, %33 : vector<32x128xf32>
    %35 = vector.extract_strided_slice %9 {offsets = [0, 512], sizes = [32, 128], strides = [1, 1]} : vector<32x1024xf32> to vector<32x128xf32>
    %36 = vector.extract_strided_slice %9 {offsets = [0, 640], sizes = [32, 128], strides = [1, 1]} : vector<32x1024xf32> to vector<32x128xf32>
    %37 = arith.maximumf %35, %36 : vector<32x128xf32>
    %38 = vector.extract_strided_slice %9 {offsets = [0, 768], sizes = [32, 128], strides = [1, 1]} : vector<32x1024xf32> to vector<32x128xf32>
    %39 = arith.maximumf %37, %38 : vector<32x128xf32>
    %40 = vector.extract_strided_slice %9 {offsets = [0, 640], sizes = [32, 128], strides = [1, 1]} : vector<32x1024xf32> to vector<32x128xf32>
    %41 = vector.extract_strided_slice %9 {offsets = [0, 768], sizes = [32, 128], strides = [1, 1]} : vector<32x1024xf32> to vector<32x128xf32>
    %42 = arith.maximumf %40, %41 : vector<32x128xf32>
    %43 = vector.extract_strided_slice %9 {offsets = [0, 896], sizes = [32, 128], strides = [1, 1]} : vector<32x1024xf32> to vector<32x128xf32>
    %44 = arith.maximumf %42, %43 : vector<32x128xf32>
    %45 = vector.extract_strided_slice %9 {offsets = [0, 0], sizes = [32, 128], strides = [1, 1]} : vector<32x1024xf32> to vector<32x128xf32>
    %46 = vector.extract_strided_slice %9 {offsets = [0, 768], sizes = [32, 128], strides = [1, 1]} : vector<32x1024xf32> to vector<32x128xf32>
    %47 = arith.maximumf %45, %46 : vector<32x128xf32>
    %48 = vector.extract_strided_slice %9 {offsets = [0, 896], sizes = [32, 128], strides = [1, 1]} : vector<32x1024xf32> to vector<32x128xf32>
    %49 = arith.maximumf %47, %48 : vector<32x128xf32>
    %50 = tpu.concatenate %14, %19, %24, %29, %34, %39, %44, %49 in 1 : vector<32x128xf32>, vector<32x128xf32>, vector<32x128xf32>, vector<32x128xf32>, vector<32x128xf32>, vector<32x128xf32>, vector<32x128xf32>, vector<32x128xf32> -> vector<32x1024xf32>
    %cst_12 = arith.constant 0.000000e+00 : f32
    %51 = vector.broadcast %cst_12 : f32 to vector<32x1024xf32>
    %52 = arith.cmpf ogt, %9, %51 : vector<32x1024xf32>
    %cst_13 = arith.constant 0.00999999977 : f32
    %53 = vector.broadcast %cst_13 : f32 to vector<32x1024xf32>
    %54 = arith.mulf %53, %9 : vector<32x1024xf32>
    %55 = arith.select %52, %9, %54 : vector<32x1024xi1>, vector<32x1024xf32>
    %cst_14 = arith.constant 0.000000e+00 : f32
    %56 = vector.broadcast %cst_14 : f32 to vector<32x1024xf32>
    %57 = arith.cmpf ogt, %50, %56 : vector<32x1024xf32>
    %cst_15 = arith.constant 0.00999999977 : f32
    %58 = vector.broadcast %cst_15 : f32 to vector<32x1024xf32>
    %59 = arith.mulf %58, %50 : vector<32x1024xf32>
    %60 = arith.select %57, %50, %59 : vector<32x1024xi1>, vector<32x1024xf32>
    %cst_16 = arith.constant dense<0.000000e+00> : vector<32x1024xf32>
    %61 = tpu.matmul %2, %55, %cst_16 {dimension_numbers = #tpu.dot_dimension_numbers<[1], [0], [0], [1], [0, 0, 1, 1], [], []>} : vector<32x32xf32>, vector<32x1024xf32>, vector<32x1024xf32> -> vector<32x1024xf32>
    %cst_17 = arith.constant dense<0.000000e+00> : vector<32x1024xf32>
    %62 = tpu.matmul %3, %60, %cst_17 {dimension_numbers = #tpu.dot_dimension_numbers<[1], [0], [0], [1], [0, 0, 1, 1], [], []>} : vector<32x32xf32>, vector<32x1024xf32>, vector<32x1024xf32> -> vector<32x1024xf32>
    %63 = arith.addf %61, %62 : vector<32x1024xf32>
    %64 = vector.broadcast %4 : vector<32x1xf32> to vector<32x1024xf32>
    %65 = arith.addf %63, %64 : vector<32x1024xf32>
    %cst_18 = arith.constant 0.000000e+00 : f32
    %66 = vector.broadcast %cst_18 : f32 to vector<32x1024xf32>
    %67 = arith.cmpf ogt, %65, %66 : vector<32x1024xf32>
    %cst_19 = arith.constant 0.00999999977 : f32
    %68 = vector.broadcast %cst_19 : f32 to vector<32x1024xf32>
    %69 = arith.mulf %68, %65 : vector<32x1024xf32>
    %70 = arith.select %67, %65, %69 : vector<32x1024xi1>, vector<32x1024xf32>
    %71 = vector.extract_strided_slice %70 {offsets = [0, 0], sizes = [32, 128], strides = [1, 1]} : vector<32x1024xf32> to vector<32x128xf32>
    %c0_20 = arith.constant 0 : index
    %c0_21 = arith.constant 0 : index
    %c0_22 = arith.constant 0 : index
    %c0_23 = arith.constant 0 : index
    %72 = vector.load %arg7[%c0_20, %c0_21, %c0_22, %c0_23] : memref<1x8x32x128xf32, #tpu.memory_space<vmem>>, vector<1x1x32x128xf32>
    %73 = vector.shape_cast %72 : vector<1x1x32x128xf32> to vector<32x128xf32>
    %74 = vector.shape_cast %71 : vector<32x128xf32> to vector<1x1x32x128xf32>
    tpu.vector_store %arg7[%c0_20, %c0_21, %c0_22, %c0_23], %74 {strides = array<i32>} : memref<1x8x32x128xf32, #tpu.memory_space<vmem>>, vector<1x1x32x128xf32>,
    %75 = vector.extract_strided_slice %70 {offsets = [0, 128], sizes = [32, 128], strides = [1, 1]} : vector<32x1024xf32> to vector<32x128xf32>
    %c0_24 = arith.constant 0 : index
    %c1 = arith.constant 1 : index
    %c0_25 = arith.constant 0 : index
    %c0_26 = arith.constant 0 : index
    %76 = vector.load %arg7[%c0_24, %c1, %c0_25, %c0_26] : memref<1x8x32x128xf32, #tpu.memory_space<vmem>>, vector<1x1x32x128xf32>
    %77 = vector.shape_cast %76 : vector<1x1x32x128xf32> to vector<32x128xf32>
    %78 = vector.shape_cast %75 : vector<32x128xf32> to vector<1x1x32x128xf32>
    tpu.vector_store %arg7[%c0_24, %c1, %c0_25, %c0_26], %78 {strides = array<i32>} : memref<1x8x32x128xf32, #tpu.memory_space<vmem>>, vector<1x1x32x128xf32>,
    %79 = vector.extract_strided_slice %70 {offsets = [0, 256], sizes = [32, 128], strides = [1, 1]} : vector<32x1024xf32> to vector<32x128xf32>
    %c0_27 = arith.constant 0 : index
    %c2 = arith.constant 2 : index
    %c0_28 = arith.constant 0 : index
    %c0_29 = arith.constant 0 : index
    %80 = vector.load %arg7[%c0_27, %c2, %c0_28, %c0_29] : memref<1x8x32x128xf32, #tpu.memory_space<vmem>>, vector<1x1x32x128xf32>
    %81 = vector.shape_cast %80 : vector<1x1x32x128xf32> to vector<32x128xf32>
    %82 = vector.shape_cast %79 : vector<32x128xf32> to vector<1x1x32x128xf32>
    tpu.vector_store %arg7[%c0_27, %c2, %c0_28, %c0_29], %82 {strides = array<i32>} : memref<1x8x32x128xf32, #tpu.memory_space<vmem>>, vector<1x1x32x128xf32>,
    %83 = vector.extract_strided_slice %70 {offsets = [0, 384], sizes = [32, 128], strides = [1, 1]} : vector<32x1024xf32> to vector<32x128xf32>
    %c0_30 = arith.constant 0 : index
    %c3 = arith.constant 3 : index
    %c0_31 = arith.constant 0 : index
    %c0_32 = arith.constant 0 : index
    %84 = vector.load %arg7[%c0_30, %c3, %c0_31, %c0_32] : memref<1x8x32x128xf32, #tpu.memory_space<vmem>>, vector<1x1x32x128xf32>
    %85 = vector.shape_cast %84 : vector<1x1x32x128xf32> to vector<32x128xf32>
    %86 = vector.shape_cast %83 : vector<32x128xf32> to vector<1x1x32x128xf32>
    tpu.vector_store %arg7[%c0_30, %c3, %c0_31, %c0_32], %86 {strides = array<i32>} : memref<1x8x32x128xf32, #tpu.memory_space<vmem>>, vector<1x1x32x128xf32>,
    %87 = vector.extract_strided_slice %70 {offsets = [0, 512], sizes = [32, 128], strides = [1, 1]} : vector<32x1024xf32> to vector<32x128xf32>
    %c0_33 = arith.constant 0 : index
    %c4 = arith.constant 4 : index
    %c0_34 = arith.constant 0 : index
    %c0_35 = arith.constant 0 : index
    %88 = vector.load %arg7[%c0_33, %c4, %c0_34, %c0_35] : memref<1x8x32x128xf32, #tpu.memory_space<vmem>>, vector<1x1x32x128xf32>
    %89 = vector.shape_cast %88 : vector<1x1x32x128xf32> to vector<32x128xf32>
    %90 = vector.shape_cast %87 : vector<32x128xf32> to vector<1x1x32x128xf32>
    tpu.vector_store %arg7[%c0_33, %c4, %c0_34, %c0_35], %90 {strides = array<i32>} : memref<1x8x32x128xf32, #tpu.memory_space<vmem>>, vector<1x1x32x128xf32>,
    %91 = vector.extract_strided_slice %70 {offsets = [0, 640], sizes = [32, 128], strides = [1, 1]} : vector<32x1024xf32> to vector<32x128xf32>
    %c0_36 = arith.constant 0 : index
    %c5 = arith.constant 5 : index
    %c0_37 = arith.constant 0 : index
    %c0_38 = arith.constant 0 : index
    %92 = vector.load %arg7[%c0_36, %c5, %c0_37, %c0_38] : memref<1x8x32x128xf32, #tpu.memory_space<vmem>>, vector<1x1x32x128xf32>
    %93 = vector.shape_cast %92 : vector<1x1x32x128xf32> to vector<32x128xf32>
    %94 = vector.shape_cast %91 : vector<32x128xf32> to vector<1x1x32x128xf32>
    tpu.vector_store %arg7[%c0_36, %c5, %c0_37, %c0_38], %94 {strides = array<i32>} : memref<1x8x32x128xf32, #tpu.memory_space<vmem>>, vector<1x1x32x128xf32>,
    %95 = vector.extract_strided_slice %70 {offsets = [0, 768], sizes = [32, 128], strides = [1, 1]} : vector<32x1024xf32> to vector<32x128xf32>
    %c0_39 = arith.constant 0 : index
    %c6 = arith.constant 6 : index
    %c0_40 = arith.constant 0 : index
    %c0_41 = arith.constant 0 : index
    %96 = vector.load %arg7[%c0_39, %c6, %c0_40, %c0_41] : memref<1x8x32x128xf32, #tpu.memory_space<vmem>>, vector<1x1x32x128xf32>
    %97 = vector.shape_cast %96 : vector<1x1x32x128xf32> to vector<32x128xf32>
    %98 = vector.shape_cast %95 : vector<32x128xf32> to vector<1x1x32x128xf32>
    tpu.vector_store %arg7[%c0_39, %c6, %c0_40, %c0_41], %98 {strides = array<i32>} : memref<1x8x32x128xf32, #tpu.memory_space<vmem>>, vector<1x1x32x128xf32>,
    %99 = vector.extract_strided_slice %70 {offsets = [0, 896], sizes = [32, 128], strides = [1, 1]} : vector<32x1024xf32> to vector<32x128xf32>
    %c0_42 = arith.constant 0 : index
    %c7 = arith.constant 7 : index
    %c0_43 = arith.constant 0 : index
    %c0_44 = arith.constant 0 : index
    %100 = vector.load %arg7[%c0_42, %c7, %c0_43, %c0_44] : memref<1x8x32x128xf32, #tpu.memory_space<vmem>>, vector<1x1x32x128xf32>
    %101 = vector.shape_cast %100 : vector<1x1x32x128xf32> to vector<32x128xf32>
    %102 = vector.shape_cast %99 : vector<32x128xf32> to vector<1x1x32x128xf32>
    tpu.vector_store %arg7[%c0_42, %c7, %c0_43, %c0_44], %102 {strides = array<i32>} : memref<1x8x32x128xf32, #tpu.memory_space<vmem>>, vector<1x1x32x128xf32>,
    return
  }
  func.func @transform_0(%arg0: i32) -> (i32, i32, i32) {
    %c0_i32 = arith.constant 0 : i32
    %c0_i32_0 = arith.constant 0 : i32
    %c0_i32_1 = arith.constant 0 : i32
    return %arg0, %c0_i32, %c0_i32_0 : i32, i32, i32
  }
  func.func @transform_1(%arg0: i32) -> (i32, i32) {
    %c0_i32 = arith.constant 0 : i32
    %c0_i32_0 = arith.constant 0 : i32
    %c0_i32_1 = arith.constant 0 : i32
    return %c0_i32, %c0_i32_0 : i32, i32
  }
  func.func @transform_2(%arg0: i32) -> (i32, i32) {
    %c0_i32 = arith.constant 0 : i32
    %c0_i32_0 = arith.constant 0 : i32
    %c0_i32_1 = arith.constant 0 : i32
    return %c0_i32, %c0_i32_0 : i32, i32
  }
  func.func @transform_3(%arg0: i32) -> (i32, i32) {
    %c0_i32 = arith.constant 0 : i32
    %c0_i32_0 = arith.constant 0 : i32
    %c0_i32_1 = arith.constant 0 : i32
    return %c0_i32, %c0_i32_0 : i32, i32
  }
  func.func @transform_4(%arg0: i32) -> (i32, i32) {
    %c0_i32 = arith.constant 0 : i32
    %c0_i32_0 = arith.constant 0 : i32
    %c0_i32_1 = arith.constant 0 : i32
    return %c0_i32, %c0_i32_0 : i32, i32
  }
  func.func @transform_5(%arg0: i32) -> (i32, i32) {
    %c0_i32 = arith.constant 0 : i32
    %c0_i32_0 = arith.constant 0 : i32
    %c0_i32_1 = arith.constant 0 : i32
    return %c0_i32, %c0_i32_0 : i32, i32
  }
  func.func @transform_6(%arg0: i32) -> (i32, i32, i32, i32) {
    %c0_i32 = arith.constant 0 : i32
    %c0_i32_0 = arith.constant 0 : i32
    %c0_i32_1 = arith.constant 0 : i32
    %c0_i32_2 = arith.constant 0 : i32
    return %arg0, %c0_i32, %c0_i32_0, %c0_i32_1 : i32, i32, i32, i32
  }
}

</mosaic_0001>

<llo_original>
// kernel: tpu_custom_call.1
$region0: #{tpu_custom_call.1}
  #allocation0 [shape = 'u32[]', space=smem, size = 0x4, offset = 0x4, fixed_abs, tag = 'smem constant byte address 0x4 - core index']
  #allocation1 [shape = 'u32[144,128]{1,0:T(1,128)}', space=vmem, size = 0x12000, scoped, tag = 'internal scratch']
  %s0 = inlined_call_operand.hbm [shape: f32[2,48,1024], index: 0, kind: input, shape index: {}]
  %s1 = inlined_call_operand.vmem [shape: f32[32,48], index: 1, kind: input, shape index: {}]
  %s2 = inlined_call_operand.vmem [shape: f32[32,1], index: 2, kind: input, shape index: {}]
  %s3 = inlined_call_operand.vmem [shape: f32[32,32], index: 3, kind: input, shape index: {}]
  %s4 = inlined_call_operand.hbm [shape: f32[32,32], index: 4, kind: input, shape index: {}]
  %s5 = inlined_call_operand.vmem [shape: f32[32,1], index: 5, kind: input, shape index: {}]
  %s6 = inlined_call_operand.hbm [shape: f32[2,8,32,128], index: 6, kind: output, shape index: {}]
  %s7 = sld [smem:[#allocation0]]
  $region65: #{tpu_custom_call.1} parent=0
    _
  %s9 = ssub.s32 1, %s7
  %s10 = scalar_select 0, %s9, %s7
  $region1: #{tpu_custom_call.1} parent=0
    #allocation2 [shape = 'u8[393216]{0}', space=vmem, size = 0x60000, scoped, tag = 'input window, operand 0']
    #allocation3 [shape = 's32[2]{0}', space=sflag, size = 0x8, scoped, tag = 'scoped memory for tpu_custom_call.1']
    #allocation4 [shape = 's32[2]{0}', space=sflag, size = 0x8, scoped, tag = 'scoped memory for tpu_custom_call.1']
    #allocation5 [shape = 'u8[16384]{0}', space=vmem, size = 0x4000, scoped, tag = 'input window, operand 4, single buffered']
    #allocation6 [shape = 's32[1]{0}', space=sflag, size = 0x4, scoped, tag = 'scoped memory for tpu_custom_call.1']
    #allocation7 [shape = 'u8[262144]{0}', space=vmem, size = 0x40000, scoped, tag = 'output window, operand 0']
    %11 = vsyncpa [#allocation3], 0
    %s12 = scalar_lea.sflag [#allocation3], 1
    %13 = vsyncpa %s12, 0
    %14 = vsyncpa [#allocation6], 0
    %15 = vsyncpa [#allocation4], 0
    %s16 = scalar_lea.sflag [#allocation4], 1
    %17 = vsyncpa %s16, 0
    loop: start=0, step=1, limit=4
    $region2: #{tpu_custom_call.1} parent=1 // loop_pre_header
      _
    $region3: #{tpu_custom_call.1} parent=1 // loop_header
      %s19 = sphi 0, %s23
      %p20 = scmp.ge.s32.totalorder %s19, 4
      %s29 = sphi 0, %s31
      %s32 = sphi 0, %s29
      %s33 = sphi 0, %s32
      %s49 = sphi 0, %s33
      %s53 = sphi 0, %s53
      %s55 = sphi 0, %s53
      %s56 = sphi 0, %s55
      %s70 = sphi 0, %s56
      %s74 = sphi 0, %s74
      %s76 = sphi 0, %s74
      %s77 = sphi 0, %s76
      %s91 = sphi 0, %s77
      %s95 = sphi 0, %s95
      %s97 = sphi 0, %s95
      %s98 = sphi 0, %s97
      %s112 = sphi 0, %s98
      %s116 = sphi 0, %s116
      %s118 = sphi 0, %s116
      %s119 = sphi 0, %s118
      %s133 = sphi 0, %s119
      %s137 = sphi 0, %s137
      %s139 = sphi 0, %s137
      %s140 = sphi 0, %s139
      %s154 = sphi 0, %s140
      %s160 = sphi 0, %s162
      %s163 = sphi 0, %s160
      %s164 = sphi 0, %s163
      %s180 = sphi 0, %s164
    $region4: #{tpu_custom_call.1} parent=1 // loop_header_branch
      %22 = sbr.rel (%p20) target = $region8
    $region5: #{tpu_custom_call.1} parent=1 // loop_body
      %s24 = ssub.s32 %s19, 1
      %s25 = ssub.s32 %s19, 2
      %s26 = sadd.s32 %s19, 1
      %s27 = ssub.s32 %s19, %s26
      %p28 = scmp.eq.s32.totalorder %s27, 0
      %s30 = sadd.s32 %s29, 1
      %s31 = scalar_select %p28, %s29, %s30
      %p34 = pneg %p28
      %p35 = scmp.eq.s32.totalorder %s19, 1
      %p36 = por %p34, %p35
      %p37 = scmp.ne.s32.totalorder %s29, %s32
      %p38 = scmp.eq.s32.totalorder %s19, 0
      %p39 = por %p37, %p38
      %p40 = scmp.ne.s32.totalorder %s29, %s32
      %p41 = scmp.eq.s32.totalorder %s24, 1
      %p42 = por %p40, %p41
      %p43 = scmp.ne.s32.totalorder %s32, %s33
      %p44 = scmp.eq.s32.totalorder %s24, 0
      %p45 = por %p43, %p44
      %p46 = scmp.ne.s32.totalorder %s32, %s33
      %p47 = scmp.eq.s32.totalorder %s25, 1
      %p48 = por %p46, %p47
      %p50 = scmp.ne.s32.totalorder %s33, %s49
      %p51 = scmp.eq.s32.totalorder %s25, 0
      %p52 = por %p50, %p51
      %s54 = sadd.s32 %s53, 1
      %p57 = scmp.eq.s32.totalorder %s19, 1
      %p58 = scmp.ne.s32.totalorder %s53, %s55
      %p59 = scmp.eq.s32.totalorder %s19, 0
      %p60 = por %p58, %p59
      %p61 = scmp.ne.s32.totalorder %s53, %s55
      %p62 = scmp.eq.s32.totalorder %s24, 1
      %p63 = por %p61, %p62
      %p64 = scmp.ne.s32.totalorder %s55, %s56
      %p65 = scmp.eq.s32.totalorder %s24, 0
      %p66 = por %p64, %p65
      %p67 = scmp.ne.s32.totalorder %s55, %s56
      %p68 = scmp.eq.s32.totalorder %s25, 1
      %p69 = por %p67, %p68
      %p71 = scmp.ne.s32.totalorder %s56, %s70
      %p72 = scmp.eq.s32.totalorder %s25, 0
      %p73 = por %p71, %p72
      %s75 = sadd.s32 %s74, 1
      %p78 = scmp.eq.s32.totalorder %s19, 1
      %p79 = scmp.ne.s32.totalorder %s74, %s76
      %p80 = scmp.eq.s32.totalorder %s19, 0
      %p81 = por %p79, %p80
      %p82 = scmp.ne.s32.totalorder %s74, %s76
      %p83 = scmp.eq.s32.totalorder %s24, 1
      %p84 = por %p82, %p83
      %p85 = scmp.ne.s32.totalorder %s76, %s77
      %p86 = scmp.eq.s32.totalorder %s24, 0
      %p87 = por %p85, %p86
      %p88 = scmp.ne.s32.totalorder %s76, %s77
      %p89 = scmp.eq.s32.totalorder %s25, 1
      %p90 = por %p88, %p89
      %p92 = scmp.ne.s32.totalorder %s77, %s91
      %p93 = scmp.eq.s32.totalorder %s25, 0
      %p94 = por %p92, %p93
      %s96 = sadd.s32 %s95, 1
      %p99 = scmp.eq.s32.totalorder %s19, 1
      %p100 = scmp.ne.s32.totalorder %s95, %s97
      %p101 = scmp.eq.s32.totalorder %s19, 0
      %p102 = por %p100, %p101
      %p103 = scmp.ne.s32.totalorder %s95, %s97
      %p104 = scmp.eq.s32.totalorder %s24, 1
      %p105 = por %p103, %p104
      %p106 = scmp.ne.s32.totalorder %s97, %s98
      %p107 = scmp.eq.s32.totalorder %s24, 0
      %p108 = por %p106, %p107
      %p109 = scmp.ne.s32.totalorder %s97, %s98
      %p110 = scmp.eq.s32.totalorder %s25, 1
      %p111 = por %p109, %p110
      %p113 = scmp.ne.s32.totalorder %s98, %s112
      %p114 = scmp.eq.s32.totalorder %s25, 0
      %p115 = por %p113, %p114
      %s117 = sadd.s32 %s116, 1
      %p120 = scmp.eq.s32.totalorder %s19, 1
      %p121 = scmp.ne.s32.totalorder %s116, %s118
      %p122 = scmp.eq.s32.totalorder %s19, 0
      %p123 = por %p121, %p122
      %p124 = scmp.ne.s32.totalorder %s116, %s118
      %p125 = scmp.eq.s32.totalorder %s24, 1
      %p126 = por %p124, %p125
      %p127 = scmp.ne.s32.totalorder %s118, %s119
      %p128 = scmp.eq.s32.totalorder %s24, 0
      %p129 = por %p127, %p128
      %p130 = scmp.ne.s32.totalorder %s118, %s119
      %p131 = scmp.eq.s32.totalorder %s25, 1
      %p132 = por %p130, %p131
      %p134 = scmp.ne.s32.totalorder %s119, %s133
      %p135 = scmp.eq.s32.totalorder %s25, 0
      %p136 = por %p134, %p135
      %s138 = sadd.s32 %s137, 1
      %p141 = scmp.eq.s32.totalorder %s19, 1
      %p142 = scmp.ne.s32.totalorder %s137, %s139
      %p143 = scmp.eq.s32.totalorder %s19, 0
      %p144 = por %p142, %p143
      %p145 = scmp.ne.s32.totalorder %s137, %s139
      %p146 = scmp.eq.s32.totalorder %s24, 1
      %p147 = por %p145, %p146
      %p148 = scmp.ne.s32.totalorder %s139, %s140
      %p149 = scmp.eq.s32.totalorder %s24, 0
      %p150 = por %p148, %p149
      %p151 = scmp.ne.s32.totalorder %s139, %s140
      %p152 = scmp.eq.s32.totalorder %s25, 1
      %p153 = por %p151, %p152
      %p155 = scmp.ne.s32.totalorder %s140, %s154
      %p156 = scmp.eq.s32.totalorder %s25, 0
      %p157 = por %p155, %p156
      %s158 = ssub.s32 %s19, %s26
      %p159 = scmp.eq.s32.totalorder %s158, 0
      %s161 = sadd.s32 %s160, 1
      %s162 = scalar_select %p159, %s160, %s161
      %p165 = pneg %p159
      %p166 = scmp.eq.s32.totalorder %s19, 1
      %p167 = por %p165, %p166
      %p168 = scmp.ne.s32.totalorder %s160, %s163
      %p169 = scmp.eq.s32.totalorder %s19, 0
      %p170 = por %p168, %p169
      %p171 = scmp.ne.s32.totalorder %s160, %s163
      %p172 = scmp.eq.s32.totalorder %s24, 1
      %p173 = por %p171, %p172
      %p174 = scmp.ne.s32.totalorder %s163, %s164
      %p175 = scmp.eq.s32.totalorder %s24, 0
      %p176 = por %p174, %p175
      %p177 = scmp.ne.s32.totalorder %s163, %s164
      %p178 = scmp.eq.s32.totalorder %s25, 1
      %p179 = por %p177, %p178
      %p181 = scmp.ne.s32.totalorder %s164, %s180
      %p182 = scmp.eq.s32.totalorder %s25, 0
      %p183 = por %p181, %p182
      %p184 = scmp.le.s32.totalorder 1, %s19
      %p185 = scmp.lt.s32.totalorder %s19, 3
      %p186 = pnand %p184, %p185
      %p187 = pneg %p186
      // Predicated region
      $region9: #{tpu_custom_call.1} parent=5 // pred_check
        _
      $region10: #{tpu_custom_call.1} parent=5 // pred_check_branch
        %189 = sbr.rel (%p186) target = $region12
      $region11: #{tpu_custom_call.1} parent=5 // pred_region
        %s190 = ssub.s32 %s19, 1
        // Predicated region
        $region13: #{tpu_custom_call.1} parent=11 // pred_check
          %p191 = pneg %p66
        $region14: #{tpu_custom_call.1} parent=11 // pred_check_branch
          %193 = sbr.rel (%p191) target = $region16
        $region15: #{tpu_custom_call.1} parent=11 // pred_region
          _
        $region16: #{tpu_custom_call.1} parent=11 // pred_fallthru
          _
        // Predicated region
        $region17: #{tpu_custom_call.1} parent=11 // pred_check
          %p194 = pneg %p87
        $region18: #{tpu_custom_call.1} parent=11 // pred_check_branch
          %196 = sbr.rel (%p194) target = $region20
        $region19: #{tpu_custom_call.1} parent=11 // pred_region
          _
        $region20: #{tpu_custom_call.1} parent=11 // pred_fallthru
          _
        // Predicated region
        $region21: #{tpu_custom_call.1} parent=11 // pred_check
          %p197 = pneg %p108
        $region22: #{tpu_custom_call.1} parent=11 // pred_check_branch
          %199 = sbr.rel (%p197) target = $region24
        $region23: #{tpu_custom_call.1} parent=11 // pred_region
          _
        $region24: #{tpu_custom_call.1} parent=11 // pred_fallthru
          _
        // Predicated region
        $region25: #{tpu_custom_call.1} parent=11 // pred_check
          %p200 = pneg %p129
        $region26: #{tpu_custom_call.1} parent=11 // pred_check_branch
          %202 = sbr.rel (%p200) target = $region28
        $region27: #{tpu_custom_call.1} parent=11 // pred_region
          %s204 = ssub.s32 512, 512
          %205 = vsyncadd [#allocation6], %s204
          %s206 = sshll.u32 [#allocation5], 4
          %s207 = int_to_ptr.vmem [resolvable:$true] %s206
          %212 = dma.hbm_to_vmem [thread:$0]  %s4, 512, %s207, [#allocation6], 128, 128, 8
        $region28: #{tpu_custom_call.1} parent=11 // pred_fallthru
          _
        // Predicated region
        $region29: #{tpu_custom_call.1} parent=11 // pred_check
          %p213 = pneg %p150
        $region30: #{tpu_custom_call.1} parent=11 // pred_check_branch
          %215 = sbr.rel (%p213) target = $region32
        $region31: #{tpu_custom_call.1} parent=11 // pred_region
          _
        $region32: #{tpu_custom_call.1} parent=11 // pred_fallthru
          _
      $region12: #{tpu_custom_call.1} parent=5 // pred_fallthru
        _
      %p216 = scmp.lt.s32.totalorder %s19, 2
      // Predicated region
      $region33: #{tpu_custom_call.1} parent=5 // pred_check
        %p217 = pneg %p216
      $region34: #{tpu_custom_call.1} parent=5 // pred_check_branch
        %219 = sbr.rel (%p217) target = $region36
      $region35: #{tpu_custom_call.1} parent=5 // pred_region
        // Predicated region
        $region37: #{tpu_custom_call.1} parent=35 // pred_check
          %p220 = pneg %p39
        $region38: #{tpu_custom_call.1} parent=35 // pred_check_branch
          %222 = sbr.rel (%p220) target = $region40
        $region39: #{tpu_custom_call.1} parent=35 // pred_region
          %s223 = sand.u32 %s29, 1
          %s224 = scalar_lea.sflag [#allocation3], %s223
          %s225 = sand.u32 %s29, 1
          %s226 = smul.addr %s225, 384
          %s227 = scalar_lea.vmem [#allocation2], %s226
          %s229 = ssub.s32 6144, 6144
          %230 = vsyncadd %s224, %s229
          %s231 = smul.addr %s19, 48
          %s232 = smul.addr %s231, 128
          %s233 = scalar_lea.hbm %s0, %s232
          %s234 = sshll.u32 %s227, 4
          %s235 = int_to_ptr.vmem [resolvable:$true] %s234
          %240 = dma.hbm_to_vmem [thread:$0]  %s233, 6144, %s235, %s224, 1024, 1024, 64
        $region40: #{tpu_custom_call.1} parent=35 // pred_fallthru
          _
      $region36: #{tpu_custom_call.1} parent=5 // pred_fallthru
        _
      %p241 = scmp.le.s32.totalorder 1, %s19
      %p242 = scmp.lt.s32.totalorder %s19, 3
      %p243 = pnand %p241, %p242
      %p244 = pneg %p243
      // Predicated region
      $region41: #{tpu_custom_call.1} parent=5 // pred_check
        _
      $region42: #{tpu_custom_call.1} parent=5 // pred_check_branch
        %246 = sbr.rel (%p243) target = $region44
      $region43: #{tpu_custom_call.1} parent=5 // pred_region
        %s247 = ssub.s32 %s19, 1
        %s248 = sand.u32 %s32, 1
        %s249 = scalar_lea.sflag [#allocation3], %s248
        %s250 = sand.u32 %s32, 1
        %s251 = smul.addr %s250, 384
        %s252 = scalar_lea.vmem [#allocation2], %s251
        // Predicated region
        $region45: #{tpu_custom_call.1} parent=43 // pred_check
          %p253 = pneg %p45
        $region46: #{tpu_custom_call.1} parent=43 // pred_check_branch
          %255 = sbr.rel (%p253) target = $region48
        $region47: #{tpu_custom_call.1} parent=43 // pred_region
          %256 = dma.done %s249, 6144
        $region48: #{tpu_custom_call.1} parent=43 // pred_fallthru
          _
        // Predicated region
        $region49: #{tpu_custom_call.1} parent=43 // pred_check
          %p257 = pneg %p129
        $region50: #{tpu_custom_call.1} parent=43 // pred_check_branch
          %259 = sbr.rel (%p257) target = $region52
        $region51: #{tpu_custom_call.1} parent=43 // pred_region
          %260 = dma.done [#allocation6], 512
        $region52: #{tpu_custom_call.1} parent=43 // pred_fallthru
          _
        %s261 = sand.u32 %s32, 1
        %s262 = scalar_lea.sflag [#allocation3], %s261
        %s263 = sand.u32 %s32, 1
        %s264 = smul.addr %s263, 384
        %s265 = scalar_lea.vmem [#allocation2], %s264
        %p266 = pneg %p45
        %p267 = pneg %p42
        %p268 = pneg %p66
        %p269 = pneg %p63
        %p270 = pneg %p87
        %p271 = pneg %p84
        %p272 = pneg %p108
        %p273 = pneg %p105
        %p274 = pneg %p129
        %p275 = pneg %p126
        %p276 = pneg %p150
        %p277 = pneg %p147
        %p278 = pneg %p176
        %p279 = pneg %p173
        %s280 = sand.u32 %s163, 1
        %s281 = scalar_lea.sflag [#allocation4], %s280
        %s282 = sand.u32 %s163, 1
        %s283 = smul.addr %s282, 256
        %s284 = scalar_lea.vmem [#allocation7], %s283
        %v285 = vld [vmem:[%s1] sm:$0xff]
        %v286 = vld [vmem:[%s1 + $0x8] sm:$0xff]
        %v287 = vld [vmem:[%s1 + $0x10] sm:$0xff]
        %v288 = vld [vmem:[%s1 + $0x18] sm:$0xff]
        %v289 = vld [vmem:[%s2] sm:$0xff]
        %v290 = vld [vmem:[%s2 + $0x8] sm:$0xff]
        %v291 = vld [vmem:[%s2 + $0x10] sm:$0xff]
        %v292 = vld [vmem:[%s2 + $0x18] sm:$0xff]
        %v293 = vld [vmem:[%s3] sm:$0xff]
        %v294 = vld [vmem:[%s3 + $0x8] sm:$0xff]
        %v295 = vld [vmem:[%s3 + $0x10] sm:$0xff]
        %v296 = vld [vmem:[%s3 + $0x18] sm:$0xff]
        %v297 = vld [vmem:[#allocation5] sm:$0xff]
        %v298 = vld [vmem:[#allocation5 + $0x8] sm:$0xff]
        %v299 = vld [vmem:[#allocation5 + $0x10] sm:$0xff]
        %v300 = vld [vmem:[#allocation5 + $0x18] sm:$0xff]
        %v301 = vld [vmem:[%s5] sm:$0xff]
        %v302 = vld [vmem:[%s5 + $0x8] sm:$0xff]
        %v303 = vld [vmem:[%s5 + $0x10] sm:$0xff]
        %v304 = vld [vmem:[%s5 + $0x18] sm:$0xff]
        %v305 = vld [vmem:[%s252] sm:$0xff]
        %v306 = vld [vmem:[%s252 + $0x8] sm:$0xff]
        %v307 = vld [vmem:[%s252 + $0x10] sm:$0xff]
        %v308 = vld [vmem:[%s252 + $0x18] sm:$0xff]
        %v309 = vld [vmem:[%s252 + $0x20] sm:$0xff]
        %v310 = vld [vmem:[%s252 + $0x28] sm:$0xff]
        %v311 = vld [vmem:[%s252 + $0x30] sm:$0xff]
        %v312 = vld [vmem:[%s252 + $0x38] sm:$0xff]
        %v313 = vld [vmem:[%s252 + $0x40] sm:$0xff]
        %v314 = vld [vmem:[%s252 + $0x48] sm:$0xff]
        %v315 = vld [vmem:[%s252 + $0x50] sm:$0xff]
        %v316 = vld [vmem:[%s252 + $0x58] sm:$0xff]
        %v317 = vld [vmem:[%s252 + $0x60] sm:$0xff]
        %v318 = vld [vmem:[%s252 + $0x68] sm:$0xff]
        %v319 = vld [vmem:[%s252 + $0x70] sm:$0xff]
        %v320 = vld [vmem:[%s252 + $0x78] sm:$0xff]
        %v321 = vld [vmem:[%s252 + $0x80] sm:$0xff]
        %v322 = vld [vmem:[%s252 + $0x88] sm:$0xff]
        %v323 = vld [vmem:[%s252 + $0x90] sm:$0xff]
        %v324 = vld [vmem:[%s252 + $0x98] sm:$0xff]
        %v325 = vld [vmem:[%s252 + $0xa0] sm:$0xff]
        %v326 = vld [vmem:[%s252 + $0xa8] sm:$0xff]
        %v327 = vld [vmem:[%s252 + $0xb0] sm:$0xff]
        %v328 = vld [vmem:[%s252 + $0xb8] sm:$0xff]
        %v329 = vld [vmem:[%s252 + $0xc0] sm:$0xff]
        %v330 = vld [vmem:[%s252 + $0xc8] sm:$0xff]
        %v331 = vld [vmem:[%s252 + $0xd0] sm:$0xff]
        %v332 = vld [vmem:[%s252 + $0xd8] sm:$0xff]
        %v333 = vld [vmem:[%s252 + $0xe0] sm:$0xff]
        %v334 = vld [vmem:[%s252 + $0xe8] sm:$0xff]
        %v335 = vld [vmem:[%s252 + $0xf0] sm:$0xff]
        %v336 = vld [vmem:[%s252 + $0xf8] sm:$0xff]
        %v337 = vld [vmem:[%s252 + $0x100] sm:$0xff]
        %v338 = vld [vmem:[%s252 + $0x108] sm:$0xff]
        %v339 = vld [vmem:[%s252 + $0x110] sm:$0xff]
        %v340 = vld [vmem:[%s252 + $0x118] sm:$0xff]
        %v341 = vld [vmem:[%s252 + $0x120] sm:$0xff]
        %v342 = vld [vmem:[%s252 + $0x128] sm:$0xff]
        %v343 = vld [vmem:[%s252 + $0x130] sm:$0xff]
        %v344 = vld [vmem:[%s252 + $0x138] sm:$0xff]
        %v345 = vld [vmem:[%s252 + $0x140] sm:$0xff]
        %v346 = vld [vmem:[%s252 + $0x148] sm:$0xff]
        %v347 = vld [vmem:[%s252 + $0x150] sm:$0xff]
        %v348 = vld [vmem:[%s252 + $0x158] sm:$0xff]
        %v349 = vld [vmem:[%s252 + $0x160] sm:$0xff]
        %v350 = vld [vmem:[%s252 + $0x168] sm:$0xff]
        %v351 = vld [vmem:[%s252 + $0x170] sm:$0xff]
        %v352 = vld [vmem:[%s252 + $0x178] sm:$0xff]
        %354 = vset.pattern.permute.xlu0 0
        %355 = vperm.xlu0 %354, %v289
        %v356 = vpop.permute.xlu0 %355
        %359 = vset.pattern.permute.xlu0 0
        %360 = vperm.xlu0 %359, %v290
        %v361 = vpop.permute.xlu0 %360
        %364 = vset.pattern.permute.xlu0 0
        %365 = vperm.xlu0 %364, %v291
        %v366 = vpop.permute.xlu0 %365
        %369 = vset.pattern.permute.xlu0 0
        %370 = vperm.xlu0 %369, %v292
        %v371 = vpop.permute.xlu0 %370
        %vm373 = vcmask 392192
        %v375 = vsel %vm373, %v285, 0
        %v378 = vsel %vm373, %v286, 0
        %v381 = vsel %vm373, %v287, 0
        %v384 = vsel %vm373, %v288, 0
        %386 = vmatprep.subr.mxu0 0.0
        %387 = vmatpush1.msra.mxu0 0.0
        %388 = vmatprep.subr.mxu0 0.0
        %389 = vmatpush1.msra.mxu0 0.0
        %390 = vmatprep.subr.mxu0 0.0
        %391 = vmatpush1.msra.mxu0 0.0
        %392 = vmatprep.subr.mxu0 0.0
        %393 = vmatpush1.msra.mxu0 0.0
        %394 = vmatprep.subr.mxu0 0.0
        %395 = vmatpush1.msra.mxu0 0.0
        %396 = vmatprep.subr.mxu0 0.0
        %397 = vmatpush1.msra.mxu0 0.0
        %398 = vmatprep.subr.mxu0 0.0
        %399 = vmatpush1.msra.mxu0 0.0
        %400 = vmatprep.subr.mxu0 0.0
        %401 = vmatpush1.msra.mxu0 0.0
        %402 = vmatprep.subr.mxu0 0.0
        %403 = vmatpush1.msra.mxu0 0.0
        %404 = vmatprep.subr.mxu0 0.0
        %405 = vmatpush1.msra.mxu0 0.0
        %406 = vmatprep.subr.mxu0 %v346
        %407 = vmatpush1.msra.mxu0 %v345
        %408 = vmatprep.subr.mxu0 %v338
        %409 = vmatpush1.msra.mxu0 %v337
        %410 = vmatprep.subr.mxu0 %v330
        %411 = vmatpush1.msra.mxu0 %v329
        %412 = vmatprep.subr.mxu0 %v322
        %413 = vmatpush1.msra.mxu0 %v321
        %414 = vmatprep.subr.mxu0 %v314
        %415 = vmatpush1.msra.mxu0 %v313
        %416 = vmatprep.subr.mxu0 %v306
        %417 = vmatpush1.msra.mxu0 %v305
        %418 = vmatprep.subr.mxu0 0.0
        %419 = vmatpush2.msra.mxu0 0.0
        %420 = vmatprep.subr.mxu0 0.0
        %421 = vmatpush2.msra.mxu0 0.0
        %422 = vmatprep.subr.mxu0 0.0
        %423 = vmatpush2.msra.mxu0 0.0
        %424 = vmatprep.subr.mxu0 0.0
        %425 = vmatpush2.msra.mxu0 0.0
        %426 = vmatprep.subr.mxu0 0.0
        %427 = vmatpush2.msra.mxu0 0.0
        %428 = vmatprep.subr.mxu0 0.0
        %429 = vmatpush2.msra.mxu0 0.0
        %430 = vmatprep.subr.mxu0 0.0
        %431 = vmatpush2.msra.mxu0 0.0
        %432 = vmatprep.subr.mxu0 0.0
        %433 = vmatpush2.msra.mxu0 0.0
        %434 = vmatprep.subr.mxu0 0.0
        %435 = vmatpush2.msra.mxu0 0.0
        %436 = vmatprep.subr.mxu0 0.0
        %437 = vmatpush2.msra.mxu0 0.0
        %438 = vmatprep.subr.mxu0 0.0
        %439 = vmatpush2.msra.mxu0 0.0
        %440 = vmatprep.subr.mxu0 0.0
        %441 = vmatpush2.msra.mxu0 0.0
        %442 = vmatprep.subr.mxu0 0.0
        %443 = vmatpush2.msra.mxu0 0.0
        %444 = vmatprep.subr.mxu0 0.0
        %445 = vmatpush2.msra.mxu0 0.0
        %446 = vmatprep.subr.mxu0 0.0
        %447 = vmatpush2.msra.mxu0 0.0
        %448 = vmatprep.subr.mxu0 0.0
        %449 = vmatpush2.msra.mxu0 0.0
        %450 = vmatprep.mubr.f32.mxu0 0.0
        %451 = vmatmul.mubr.f32.gmra.mxu0 %v375
        %v452 = vpop.f32.mrf.mxu0
        %v453 = vadd.f32 %v356, %v452
        %v454 = vpop.f32.mrf.mxu0
        %v455 = vadd.f32 %v356, %v454
        %456 = vmatprep.mubr.f32.mxu0 0.0
        %457 = vmatmul.mubr.f32.gmra.mxu0 %v378
        %v458 = vpop.f32.mrf.mxu0
        %v459 = vadd.f32 %v361, %v458
        %v460 = vpop.f32.mrf.mxu0
        %v461 = vadd.f32 %v361, %v460
        %462 = vmatprep.mubr.f32.mxu0 0.0
        %463 = vmatmul.mubr.f32.gmra.mxu0 %v381
        %v464 = vpop.f32.mrf.mxu0
        %v465 = vadd.f32 %v366, %v464
        %v466 = vpop.f32.mrf.mxu0
        %v467 = vadd.f32 %v366, %v466
        %468 = vmatprep.mubr.f32.mxu0 0.0
        %469 = vmatmul.mubr.f32.gmra.mxu0 %v384
        %v470 = vpop.f32.mrf.mxu0
        %v471 = vadd.f32 %v371, %v470
        %v472 = vpop.f32.mrf.mxu0
        %v473 = vadd.f32 %v371, %v472
        %474 = vdwg.mxu0
        %475 = vmatprep.subr.mxu0 0.0
        %476 = vmatpush1.msra.mxu0 0.0
        %477 = vmatprep.subr.mxu0 0.0
        %478 = vmatpush1.msra.mxu0 0.0
        %479 = vmatprep.subr.mxu0 0.0
        %480 = vmatpush1.msra.mxu0 0.0
        %481 = vmatprep.subr.mxu0 0.0
        %482 = vmatpush1.msra.mxu0 0.0
        %483 = vmatprep.subr.mxu0 0.0
        %484 = vmatpush1.msra.mxu0 0.0
        %485 = vmatprep.subr.mxu0 0.0
        %486 = vmatpush1.msra.mxu0 0.0
        %487 = vmatprep.subr.mxu0 0.0
        %488 = vmatpush1.msra.mxu0 0.0
        %489 = vmatprep.subr.mxu0 0.0
        %490 = vmatpush1.msra.mxu0 0.0
        %491 = vmatprep.subr.mxu0 0.0
        %492 = vmatpush1.msra.mxu0 0.0
        %493 = vmatprep.subr.mxu0 0.0
        %494 = vmatpush1.msra.mxu0 0.0
        %495 = vmatprep.subr.mxu0 %v348
        %496 = vmatpush1.msra.mxu0 %v347
        %497 = vmatprep.subr.mxu0 %v340
        %498 = vmatpush1.msra.mxu0 %v339
        %499 = vmatprep.subr.mxu0 %v332
        %500 = vmatpush1.msra.mxu0 %v331
        %501 = vmatprep.subr.mxu0 %v324
        %502 = vmatpush1.msra.mxu0 %v323
        %503 = vmatprep.subr.mxu0 %v316
        %504 = vmatpush1.msra.mxu0 %v315
        %505 = vmatprep.subr.mxu0 %v308
        %506 = vmatpush1.msra.mxu0 %v307
        %507 = vmatprep.subr.mxu0 0.0
        %508 = vmatpush2.msra.mxu0 0.0
        %509 = vmatprep.subr.mxu0 0.0
        %510 = vmatpush2.msra.mxu0 0.0
        %511 = vmatprep.subr.mxu0 0.0
        %512 = vmatpush2.msra.mxu0 0.0
        %513 = vmatprep.subr.mxu0 0.0
        %514 = vmatpush2.msra.mxu0 0.0
        %515 = vmatprep.subr.mxu0 0.0
        %516 = vmatpush2.msra.mxu0 0.0
        %517 = vmatprep.subr.mxu0 0.0
        %518 = vmatpush2.msra.mxu0 0.0
        %519 = vmatprep.subr.mxu0 0.0
        %520 = vmatpush2.msra.mxu0 0.0
        %521 = vmatprep.subr.mxu0 0.0
        %522 = vmatpush2.msra.mxu0 0.0
        %523 = vmatprep.subr.mxu0 0.0
        %524 = vmatpush2.msra.mxu0 0.0
        %525 = vmatprep.subr.mxu0 0.0
        %526 = vmatpush2.msra.mxu0 0.0
        %527 = vmatprep.subr.mxu0 0.0
        %528 = vmatpush2.msra.mxu0 0.0
        %529 = vmatprep.subr.mxu0 0.0
        %530 = vmatpush2.msra.mxu0 0.0
        %531 = vmatprep.subr.mxu0 0.0
        %532 = vmatpush2.msra.mxu0 0.0
        %533 = vmatprep.subr.mxu0 0.0
        %534 = vmatpush2.msra.mxu0 0.0
        %535 = vmatprep.subr.mxu0 0.0
        %536 = vmatpush2.msra.mxu0 0.0
        %537 = vmatprep.subr.mxu0 0.0
        %538 = vmatpush2.msra.mxu0 0.0
        %539 = vmatprep.mubr.f32.mxu0 0.0
        %540 = vmatmul.mubr.f32.gmra.mxu0 %v375
        %v541 = vpop.f32.mrf.mxu0
        %v542 = vadd.f32 %v356, %v541
        %v543 = vpop.f32.mrf.mxu0
        %v544 = vadd.f32 %v356, %v543
        %545 = vmatprep.mubr.f32.mxu0 0.0
        %546 = vmatmul.mubr.f32.gmra.mxu0 %v378
        %v547 = vpop.f32.mrf.mxu0
        %v548 = vadd.f32 %v361, %v547
        %v549 = vpop.f32.mrf.mxu0
        %v550 = vadd.f32 %v361, %v549
        %551 = vmatprep.mubr.f32.mxu0 0.0
        %552 = vmatmul.mubr.f32.gmra.mxu0 %v381
        %v553 = vpop.f32.mrf.mxu0
        %v554 = vadd.f32 %v366, %v553
        %v555 = vpop.f32.mrf.mxu0
        %v556 = vadd.f32 %v366, %v555
        %557 = vmatprep.mubr.f32.mxu0 0.0
        %558 = vmatmul.mubr.f32.gmra.mxu0 %v384
        %v559 = vpop.f32.mrf.mxu0
        %v560 = vadd.f32 %v371, %v559
        %v561 = vpop.f32.mrf.mxu0
        %v562 = vadd.f32 %v371, %v561
        %563 = vdwg.mxu0
        %564 = vmatprep.subr.mxu0 0.0
        %565 = vmatpush1.msra.mxu0 0.0
        %566 = vmatprep.subr.mxu0 0.0
        %567 = vmatpush1.msra.mxu0 0.0
        %568 = vmatprep.subr.mxu0 0.0
        %569 = vmatpush1.msra.mxu0 0.0
        %570 = vmatprep.subr.mxu0 0.0
        %571 = vmatpush1.msra.mxu0 0.0
        %572 = vmatprep.subr.mxu0 0.0
        %573 = vmatpush1.msra.mxu0 0.0
        %574 = vmatprep.subr.mxu0 0.0
        %575 = vmatpush1.msra.mxu0 0.0
        %576 = vmatprep.subr.mxu0 0.0
        %577 = vmatpush1.msra.mxu0 0.0
        %578 = vmatprep.subr.mxu0 0.0
        %579 = vmatpush1.msra.mxu0 0.0
        %580 = vmatprep.subr.mxu0 0.0
        %581 = vmatpush1.msra.mxu0 0.0
        %582 = vmatprep.subr.mxu0 0.0
        %583 = vmatpush1.msra.mxu0 0.0
        %584 = vmatprep.subr.mxu0 %v350
        %585 = vmatpush1.msra.mxu0 %v349
        %586 = vmatprep.subr.mxu0 %v342
        %587 = vmatpush1.msra.mxu0 %v341
        %588 = vmatprep.subr.mxu0 %v334
        %589 = vmatpush1.msra.mxu0 %v333
        %590 = vmatprep.subr.mxu0 %v326
        %591 = vmatpush1.msra.mxu0 %v325
        %592 = vmatprep.subr.mxu0 %v318
        %593 = vmatpush1.msra.mxu0 %v317
        %594 = vmatprep.subr.mxu0 %v310
        %595 = vmatpush1.msra.mxu0 %v309
        %596 = vmatprep.subr.mxu0 0.0
        %597 = vmatpush2.msra.mxu0 0.0
        %598 = vmatprep.subr.mxu0 0.0
        %599 = vmatpush2.msra.mxu0 0.0
        %600 = vmatprep.subr.mxu0 0.0
        %601 = vmatpush2.msra.mxu0 0.0
        %602 = vmatprep.subr.mxu0 0.0
        %603 = vmatpush2.msra.mxu0 0.0
        %604 = vmatprep.subr.mxu0 0.0
        %605 = vmatpush2.msra.mxu0 0.0
        %606 = vmatprep.subr.mxu0 0.0
        %607 = vmatpush2.msra.mxu0 0.0
        %608 = vmatprep.subr.mxu0 0.0
        %609 = vmatpush2.msra.mxu0 0.0
        %610 = vmatprep.subr.mxu0 0.0
        %611 = vmatpush2.msra.mxu0 0.0
        %612 = vmatprep.subr.mxu0 0.0
        %613 = vmatpush2.msra.mxu0 0.0
        %614 = vmatprep.subr.mxu0 0.0
        %615 = vmatpush2.msra.mxu0 0.0
        %616 = vmatprep.subr.mxu0 0.0
        %617 = vmatpush2.msra.mxu0 0.0
        %618 = vmatprep.subr.mxu0 0.0
        %619 = vmatpush2.msra.mxu0 0.0
        %620 = vmatprep.subr.mxu0 0.0
        %621 = vmatpush2.msra.mxu0 0.0
        %622 = vmatprep.subr.mxu0 0.0
        %623 = vmatpush2.msra.mxu0 0.0
        %624 = vmatprep.subr.mxu0 0.0
        %625 = vmatpush2.msra.mxu0 0.0
        %626 = vmatprep.subr.mxu0 0.0
        %627 = vmatpush2.msra.mxu0 0.0
        %628 = vmatprep.mubr.f32.mxu0 0.0
        %629 = vmatmul.mubr.f32.gmra.mxu0 %v375
        %v630 = vpop.f32.mrf.mxu0
        %v631 = vadd.f32 %v356, %v630
        %v632 = vpop.f32.mrf.mxu0
        %v633 = vadd.f32 %v356, %v632
        %634 = vmatprep.mubr.f32.mxu0 0.0
        %635 = vmatmul.mubr.f32.gmra.mxu0 %v378
        %v636 = vpop.f32.mrf.mxu0
        %v637 = vadd.f32 %v361, %v636
        %v638 = vpop.f32.mrf.mxu0
        %v639 = vadd.f32 %v361, %v638
        %640 = vmatprep.mubr.f32.mxu0 0.0
        %641 = vmatmul.mubr.f32.gmra.mxu0 %v381
        %v642 = vpop.f32.mrf.mxu0
        %v643 = vadd.f32 %v366, %v642
        %v644 = vpop.f32.mrf.mxu0
        %v645 = vadd.f32 %v366, %v644
        %646 = vmatprep.mubr.f32.mxu0 0.0
        %647 = vmatmul.mubr.f32.gmra.mxu0 %v384
        %v648 = vpop.f32.mrf.mxu0
        %v649 = vadd.f32 %v371, %v648
        %v650 = vpop.f32.mrf.mxu0
        %v651 = vadd.f32 %v371, %v650
        %652 = vdwg.mxu0
        %653 = vmatprep.subr.mxu0 0.0
        %654 = vmatpush1.msra.mxu0 0.0
        %655 = vmatprep.subr.mxu0 0.0
        %656 = vmatpush1.msra.mxu0 0.0
        %657 = vmatprep.subr.mxu0 0.0
        %658 = vmatpush1.msra.mxu0 0.0
        %659 = vmatprep.subr.mxu0 0.0
        %660 = vmatpush1.msra.mxu0 0.0
        %661 = vmatprep.subr.mxu0 0.0
        %662 = vmatpush1.msra.mxu0 0.0
        %663 = vmatprep.subr.mxu0 0.0
        %664 = vmatpush1.msra.mxu0 0.0
        %665 = vmatprep.subr.mxu0 0.0
        %666 = vmatpush1.msra.mxu0 0.0
        %667 = vmatprep.subr.mxu0 0.0
        %668 = vmatpush1.msra.mxu0 0.0
        %669 = vmatprep.subr.mxu0 0.0
        %670 = vmatpush1.msra.mxu0 0.0
        %671 = vmatprep.subr.mxu0 0.0
        %672 = vmatpush1.msra.mxu0 0.0
        %673 = vmatprep.subr.mxu0 %v352
        %674 = vmatpush1.msra.mxu0 %v351
        %675 = vmatprep.subr.mxu0 %v344
        %676 = vmatpush1.msra.mxu0 %v343
        %677 = vmatprep.subr.mxu0 %v336
        %678 = vmatpush1.msra.mxu0 %v335
        %679 = vmatprep.subr.mxu0 %v328
        %680 = vmatpush1.msra.mxu0 %v327
        %681 = vmatprep.subr.mxu0 %v320
        %682 = vmatpush1.msra.mxu0 %v319
        %683 = vmatprep.subr.mxu0 %v312
        %684 = vmatpush1.msra.mxu0 %v311
        %685 = vmatprep.subr.mxu0 0.0
        %686 = vmatpush2.msra.mxu0 0.0
        %687 = vmatprep.subr.mxu0 0.0
        %688 = vmatpush2.msra.mxu0 0.0
        %689 = vmatprep.subr.mxu0 0.0
        %690 = vmatpush2.msra.mxu0 0.0
        %691 = vmatprep.subr.mxu0 0.0
        %692 = vmatpush2.msra.mxu0 0.0
        %693 = vmatprep.subr.mxu0 0.0
        %694 = vmatpush2.msra.mxu0 0.0
        %695 = vmatprep.subr.mxu0 0.0
        %696 = vmatpush2.msra.mxu0 0.0
        %697 = vmatprep.subr.mxu0 0.0
        %698 = vmatpush2.msra.mxu0 0.0
        %699 = vmatprep.subr.mxu0 0.0
        %700 = vmatpush2.msra.mxu0 0.0
        %701 = vmatprep.subr.mxu0 0.0
        %702 = vmatpush2.msra.mxu0 0.0
        %703 = vmatprep.subr.mxu0 0.0
        %704 = vmatpush2.msra.mxu0 0.0
        %705 = vmatprep.subr.mxu0 0.0
        %706 = vmatpush2.msra.mxu0 0.0
        %707 = vmatprep.subr.mxu0 0.0
        %708 = vmatpush2.msra.mxu0 0.0
        %709 = vmatprep.subr.mxu0 0.0
        %710 = vmatpush2.msra.mxu0 0.0
        %711 = vmatprep.subr.mxu0 0.0
        %712 = vmatpush2.msra.mxu0 0.0
        %713 = vmatprep.subr.mxu0 0.0
        %714 = vmatpush2.msra.mxu0 0.0
        %715 = vmatprep.subr.mxu0 0.0
        %716 = vmatpush2.msra.mxu0 0.0
        %717 = vmatprep.mubr.f32.mxu0 0.0
        %718 = vmatmul.mubr.f32.gmra.mxu0 %v375
        %v719 = vpop.f32.mrf.mxu0
        %v720 = vadd.f32 %v356, %v719
        %v721 = vpop.f32.mrf.mxu0
        %v722 = vadd.f32 %v356, %v721
        %723 = vmatprep.mubr.f32.mxu0 0.0
        %724 = vmatmul.mubr.f32.gmra.mxu0 %v378
        %v725 = vpop.f32.mrf.mxu0
        %v726 = vadd.f32 %v361, %v725
        %v727 = vpop.f32.mrf.mxu0
        %v728 = vadd.f32 %v361, %v727
        %729 = vmatprep.mubr.f32.mxu0 0.0
        %730 = vmatmul.mubr.f32.gmra.mxu0 %v381
        %v731 = vpop.f32.mrf.mxu0
        %v732 = vadd.f32 %v366, %v731
        %v733 = vpop.f32.mrf.mxu0
        %v734 = vadd.f32 %v366, %v733
        %735 = vmatprep.mubr.f32.mxu0 0.0
        %736 = vmatmul.mubr.f32.gmra.mxu0 %v384
        %v737 = vpop.f32.mrf.mxu0
        %v738 = vadd.f32 %v371, %v737
        %v739 = vpop.f32.mrf.mxu0
        %v740 = vadd.f32 %v371, %v739
        %741 = vdwg.mxu0
        %v742 = vmax.f32 %v453, %v455
        %v743 = vmax.f32 %v459, %v461
        %v744 = vmax.f32 %v465, %v467
        %v745 = vmax.f32 %v471, %v473
        %v746 = vmax.f32 %v742, %v722
        %v747 = vmax.f32 %v743, %v728
        %v748 = vmax.f32 %v744, %v734
        %v749 = vmax.f32 %v745, %v740
        %v750 = vmax.f32 %v742, %v542
        %v751 = vmax.f32 %v743, %v548
        %v752 = vmax.f32 %v744, %v554
        %v753 = vmax.f32 %v745, %v560
        %v754 = vmax.f32 %v455, %v542
        %v755 = vmax.f32 %v461, %v548
        %v756 = vmax.f32 %v467, %v554
        %v757 = vmax.f32 %v473, %v560
        %v758 = vmax.f32 %v754, %v544
        %v759 = vmax.f32 %v755, %v550
        %v760 = vmax.f32 %v756, %v556
        %v761 = vmax.f32 %v757, %v562
        %v762 = vmax.f32 %v542, %v544
        %v763 = vmax.f32 %v548, %v550
        %v764 = vmax.f32 %v554, %v556
        %v765 = vmax.f32 %v560, %v562
        %v766 = vmax.f32 %v762, %v631
        %v767 = vmax.f32 %v763, %v637
        %v768 = vmax.f32 %v764, %v643
        %v769 = vmax.f32 %v765, %v649
        %v770 = vmax.f32 %v544, %v631
        %v771 = vmax.f32 %v550, %v637
        %v772 = vmax.f32 %v556, %v643
        %v773 = vmax.f32 %v562, %v649
        %v774 = vmax.f32 %v770, %v633
        %v775 = vmax.f32 %v771, %v639
        %v776 = vmax.f32 %v772, %v645
        %v777 = vmax.f32 %v773, %v651
        %v778 = vmax.f32 %v631, %v633
        %v779 = vmax.f32 %v637, %v639
        %v780 = vmax.f32 %v643, %v645
        %v781 = vmax.f32 %v649, %v651
        %v782 = vmax.f32 %v778, %v720
        %v783 = vmax.f32 %v779, %v726
        %v784 = vmax.f32 %v780, %v732
        %v785 = vmax.f32 %v781, %v738
        %v786 = vmax.f32 %v633, %v720
        %v787 = vmax.f32 %v639, %v726
        %v788 = vmax.f32 %v645, %v732
        %v789 = vmax.f32 %v651, %v738
        %v790 = vmax.f32 %v786, %v722
        %v791 = vmax.f32 %v787, %v728
        %v792 = vmax.f32 %v788, %v734
        %v793 = vmax.f32 %v789, %v740
        %v794 = vmax.f32 %v453, %v720
        %v795 = vmax.f32 %v459, %v726
        %v796 = vmax.f32 %v465, %v732
        %v797 = vmax.f32 %v471, %v738
        %v798 = vmax.f32 %v794, %v722
        %v799 = vmax.f32 %v795, %v728
        %v800 = vmax.f32 %v796, %v734
        %v801 = vmax.f32 %v797, %v740
        %vm802 = vcmp.gt.f32.partialorder %v453, 0.0
        %vm803 = vcmp.gt.f32.partialorder %v455, 0.0
        %vm804 = vcmp.gt.f32.partialorder %v542, 0.0
        %vm805 = vcmp.gt.f32.partialorder %v544, 0.0
        %vm806 = vcmp.gt.f32.partialorder %v631, 0.0
        %vm807 = vcmp.gt.f32.partialorder %v633, 0.0
        %vm808 = vcmp.gt.f32.partialorder %v720, 0.0
        %vm809 = vcmp.gt.f32.partialorder %v722, 0.0
        %vm810 = vcmp.gt.f32.partialorder %v459, 0.0
        %vm811 = vcmp.gt.f32.partialorder %v461, 0.0
        %vm812 = vcmp.gt.f32.partialorder %v548, 0.0
        %vm813 = vcmp.gt.f32.partialorder %v550, 0.0
        %vm814 = vcmp.gt.f32.partialorder %v637, 0.0
        %vm815 = vcmp.gt.f32.partialorder %v639, 0.0
        %vm816 = vcmp.gt.f32.partialorder %v726, 0.0
        %vm817 = vcmp.gt.f32.partialorder %v728, 0.0
        %vm818 = vcmp.gt.f32.partialorder %v465, 0.0
        %vm819 = vcmp.gt.f32.partialorder %v467, 0.0
        %vm820 = vcmp.gt.f32.partialorder %v554, 0.0
        %vm821 = vcmp.gt.f32.partialorder %v556, 0.0
        %vm822 = vcmp.gt.f32.partialorder %v643, 0.0
        %vm823 = vcmp.gt.f32.partialorder %v645, 0.0
        %vm824 = vcmp.gt.f32.partialorder %v732, 0.0
        %vm825 = vcmp.gt.f32.partialorder %v734, 0.0
        %vm826 = vcmp.gt.f32.partialorder %v471, 0.0
        %vm827 = vcmp.gt.f32.partialorder %v473, 0.0
        %vm828 = vcmp.gt.f32.partialorder %v560, 0.0
        %vm829 = vcmp.gt.f32.partialorder %v562, 0.0
        %vm830 = vcmp.gt.f32.partialorder %v649, 0.0
        %vm831 = vcmp.gt.f32.partialorder %v651, 0.0
        %vm832 = vcmp.gt.f32.partialorder %v738, 0.0
        %vm833 = vcmp.gt.f32.partialorder %v740, 0.0
        %v834 = vmul.f32 %v453, 0.01
        %v835 = vmul.f32 %v455, 0.01
        %v836 = vmul.f32 %v542, 0.01
        %v837 = vmul.f32 %v544, 0.01
        %v838 = vmul.f32 %v631, 0.01
        %v839 = vmul.f32 %v633, 0.01
        %v840 = vmul.f32 %v720, 0.01
        %v841 = vmul.f32 %v722, 0.01
        %v842 = vmul.f32 %v459, 0.01
        %v843 = vmul.f32 %v461, 0.01
        %v844 = vmul.f32 %v548, 0.01
        %v845 = vmul.f32 %v550, 0.01
        %v846 = vmul.f32 %v637, 0.01
        %v847 = vmul.f32 %v639, 0.01
        %v848 = vmul.f32 %v726, 0.01
        %v849 = vmul.f32 %v728, 0.01
        %v850 = vmul.f32 %v465, 0.01
        %v851 = vmul.f32 %v467, 0.01
        %v852 = vmul.f32 %v554, 0.01
        %v853 = vmul.f32 %v556, 0.01
        %v854 = vmul.f32 %v643, 0.01
        %v855 = vmul.f32 %v645, 0.01
        %v856 = vmul.f32 %v732, 0.01
        %v857 = vmul.f32 %v734, 0.01
        %v858 = vmul.f32 %v471, 0.01
        %v859 = vmul.f32 %v473, 0.01
        %v860 = vmul.f32 %v560, 0.01
        %v861 = vmul.f32 %v562, 0.01
        %v862 = vmul.f32 %v649, 0.01
        %v863 = vmul.f32 %v651, 0.01
        %v864 = vmul.f32 %v738, 0.01
        %v865 = vmul.f32 %v740, 0.01
        %v866 = vsel %vm802, %v453, %v834
        %v867 = vsel %vm803, %v455, %v835
        %v868 = vsel %vm804, %v542, %v836
        %v869 = vsel %vm805, %v544, %v837
        %v870 = vsel %vm806, %v631, %v838
        %v871 = vsel %vm807, %v633, %v839
        %v872 = vsel %vm808, %v720, %v840
        %v873 = vsel %vm809, %v722, %v841
        %v874 = vsel %vm810, %v459, %v842
        %v875 = vsel %vm811, %v461, %v843
        %v876 = vsel %vm812, %v548, %v844
        %v877 = vsel %vm813, %v550, %v845
        %v878 = vsel %vm814, %v637, %v846
        %v879 = vsel %vm815, %v639, %v847
        %v880 = vsel %vm816, %v726, %v848
        %v881 = vsel %vm817, %v728, %v849
        %v882 = vsel %vm818, %v465, %v850
        %v883 = vsel %vm819, %v467, %v851
        %v884 = vsel %vm820, %v554, %v852
        %v885 = vsel %vm821, %v556, %v853
        %v886 = vsel %vm822, %v643, %v854
        %v887 = vsel %vm823, %v645, %v855
        %v888 = vsel %vm824, %v732, %v856
        %v889 = vsel %vm825, %v734, %v857
        %v890 = vsel %vm826, %v471, %v858
        %v891 = vsel %vm827, %v473, %v859
        %v892 = vsel %vm828, %v560, %v860
        %v893 = vsel %vm829, %v562, %v861
        %v894 = vsel %vm830, %v649, %v862
        %v895 = vsel %vm831, %v651, %v863
        %v896 = vsel %vm832, %v738, %v864
        %v897 = vsel %vm833, %v740, %v865
        %vm898 = vcmp.gt.f32.partialorder %v746, 0.0
        %vm899 = vcmp.gt.f32.partialorder %v750, 0.0
        %vm900 = vcmp.gt.f32.partialorder %v758, 0.0
        %vm901 = vcmp.gt.f32.partialorder %v766, 0.0
        %vm902 = vcmp.gt.f32.partialorder %v774, 0.0
        %vm903 = vcmp.gt.f32.partialorder %v782, 0.0
        %vm904 = vcmp.gt.f32.partialorder %v790, 0.0
        %vm905 = vcmp.gt.f32.partialorder %v798, 0.0
        %vm906 = vcmp.gt.f32.partialorder %v747, 0.0
        %vm907 = vcmp.gt.f32.partialorder %v751, 0.0
        %vm908 = vcmp.gt.f32.partialorder %v759, 0.0
        %vm909 = vcmp.gt.f32.partialorder %v767, 0.0
        %vm910 = vcmp.gt.f32.partialorder %v775, 0.0
        %vm911 = vcmp.gt.f32.partialorder %v783, 0.0
        %vm912 = vcmp.gt.f32.partialorder %v791, 0.0
        %vm913 = vcmp.gt.f32.partialorder %v799, 0.0
        %vm914 = vcmp.gt.f32.partialorder %v748, 0.0
        %vm915 = vcmp.gt.f32.partialorder %v752, 0.0
        %vm916 = vcmp.gt.f32.partialorder %v760, 0.0
        %vm917 = vcmp.gt.f32.partialorder %v768, 0.0
        %vm918 = vcmp.gt.f32.partialorder %v776, 0.0
        %vm919 = vcmp.gt.f32.partialorder %v784, 0.0
        %vm920 = vcmp.gt.f32.partialorder %v792, 0.0
        %vm921 = vcmp.gt.f32.partialorder %v800, 0.0
        %vm922 = vcmp.gt.f32.partialorder %v749, 0.0
        %vm923 = vcmp.gt.f32.partialorder %v753, 0.0
        %vm924 = vcmp.gt.f32.partialorder %v761, 0.0
        %vm925 = vcmp.gt.f32.partialorder %v769, 0.0
        %vm926 = vcmp.gt.f32.partialorder %v777, 0.0
        %vm927 = vcmp.gt.f32.partialorder %v785, 0.0
        %vm928 = vcmp.gt.f32.partialorder %v793, 0.0
        %vm929 = vcmp.gt.f32.partialorder %v801, 0.0
        %v930 = vmul.f32 %v746, 0.01
        %v931 = vmul.f32 %v750, 0.01
        %v932 = vmul.f32 %v758, 0.01
        %v933 = vmul.f32 %v766, 0.01
        %v934 = vmul.f32 %v774, 0.01
        %v935 = vmul.f32 %v782, 0.01
        %v936 = vmul.f32 %v790, 0.01
        %v937 = vmul.f32 %v798, 0.01
        %v938 = vmul.f32 %v747, 0.01
        %v939 = vmul.f32 %v751, 0.01
        %v940 = vmul.f32 %v759, 0.01
        %v941 = vmul.f32 %v767, 0.01
        %v942 = vmul.f32 %v775, 0.01
        %v943 = vmul.f32 %v783, 0.01
        %v944 = vmul.f32 %v791, 0.01
        %v945 = vmul.f32 %v799, 0.01
        %v946 = vmul.f32 %v748, 0.01
        %v947 = vmul.f32 %v752, 0.01
        %v948 = vmul.f32 %v760, 0.01
        %v949 = vmul.f32 %v768, 0.01
        %v950 = vmul.f32 %v776, 0.01
        %v951 = vmul.f32 %v784, 0.01
        %v952 = vmul.f32 %v792, 0.01
        %v953 = vmul.f32 %v800, 0.01
        %v954 = vmul.f32 %v749, 0.01
        %v955 = vmul.f32 %v753, 0.01
        %v956 = vmul.f32 %v761, 0.01
        %v957 = vmul.f32 %v769, 0.01
        %v958 = vmul.f32 %v777, 0.01
        %v959 = vmul.f32 %v785, 0.01
        %v960 = vmul.f32 %v793, 0.01
        %v961 = vmul.f32 %v801, 0.01
        %v962 = vsel %vm898, %v746, %v930
        %v963 = vsel %vm899, %v750, %v931
        %v964 = vsel %vm900, %v758, %v932
        %v965 = vsel %vm901, %v766, %v933
        %v966 = vsel %vm902, %v774, %v934
        %v967 = vsel %vm903, %v782, %v935
        %v968 = vsel %vm904, %v790, %v936
        %v969 = vsel %vm905, %v798, %v937
        %v970 = vsel %vm906, %v747, %v938
        %v971 = vsel %vm907, %v751, %v939
        %v972 = vsel %vm908, %v759, %v940
        %v973 = vsel %vm909, %v767, %v941
        %v974 = vsel %vm910, %v775, %v942
        %v975 = vsel %vm911, %v783, %v943
        %v976 = vsel %vm912, %v791, %v944
        %v977 = vsel %vm913, %v799, %v945
        %v978 = vsel %vm914, %v748, %v946
        %v979 = vsel %vm915, %v752, %v947
        %v980 = vsel %vm916, %v760, %v948
        %v981 = vsel %vm917, %v768, %v949
        %v982 = vsel %vm918, %v776, %v950
        %v983 = vsel %vm919, %v784, %v951
        %v984 = vsel %vm920, %v792, %v952
        %v985 = vsel %vm921, %v800, %v953
        %v986 = vsel %vm922, %v749, %v954
        %v987 = vsel %vm923, %v753, %v955
        %v988 = vsel %vm924, %v761, %v956
        %v989 = vsel %vm925, %v769, %v957
        %v990 = vsel %vm926, %v777, %v958
        %v991 = vsel %vm927, %v785, %v959
        %v992 = vsel %vm928, %v793, %v960
        %v993 = vsel %vm929, %v801, %v961
        %vm994 = vcmask 261120
        %v996 = vsel %vm994, %v297, 0
        %v999 = vsel %vm994, %v298, 0
        %v1002 = vsel %vm994, %v299, 0
        %v1005 = vsel %vm994, %v300, 0
        %1007 = vmatprep.subr.mxu0 0.0
        %1008 = vmatpush1.msra.mxu0 0.0
        %1009 = vmatprep.subr.mxu0 0.0
        %1010 = vmatpush1.msra.mxu0 0.0
        %1011 = vmatprep.subr.mxu0 0.0
        %1012 = vmatpush1.msra.mxu0 0.0
        %1013 = vmatprep.subr.mxu0 0.0
        %1014 = vmatpush1.msra.mxu0 0.0
        %1015 = vmatprep.subr.mxu0 0.0
        %1016 = vmatpush1.msra.mxu0 0.0
        %1017 = vmatprep.subr.mxu0 0.0
        %1018 = vmatpush1.msra.mxu0 0.0
        %1019 = vmatprep.subr.mxu0 0.0
        %1020 = vmatpush1.msra.mxu0 0.0
        %1021 = vmatprep.subr.mxu0 0.0
        %1022 = vmatpush1.msra.mxu0 0.0
        %1023 = vmatprep.subr.mxu0 0.0
        %1024 = vmatpush1.msra.mxu0 0.0
        %1025 = vmatprep.subr.mxu0 0.0
        %1026 = vmatpush1.msra.mxu0 0.0
        %1027 = vmatprep.subr.mxu0 0.0
        %1028 = vmatpush1.msra.mxu0 0.0
        %1029 = vmatprep.subr.mxu0 0.0
        %1030 = vmatpush1.msra.mxu0 0.0
        %1031 = vmatprep.subr.mxu0 %v987
        %1032 = vmatpush1.msra.mxu0 %v986
        %1033 = vmatprep.subr.mxu0 %v979
        %1034 = vmatpush1.msra.mxu0 %v978
        %1035 = vmatprep.subr.mxu0 %v971
        %1036 = vmatpush1.msra.mxu0 %v970
        %1037 = vmatprep.subr.mxu0 %v963
        %1038 = vmatpush1.msra.mxu0 %v962
        %1039 = vmatprep.subr.mxu0 0.0
        %1040 = vmatpush2.msra.mxu0 0.0
        %1041 = vmatprep.subr.mxu0 0.0
        %1042 = vmatpush2.msra.mxu0 0.0
        %1043 = vmatprep.subr.mxu0 0.0
        %1044 = vmatpush2.msra.mxu0 0.0
        %1045 = vmatprep.subr.mxu0 0.0
        %1046 = vmatpush2.msra.mxu0 0.0
        %1047 = vmatprep.subr.mxu0 0.0
        %1048 = vmatpush2.msra.mxu0 0.0
        %1049 = vmatprep.subr.mxu0 0.0
        %1050 = vmatpush2.msra.mxu0 0.0
        %1051 = vmatprep.subr.mxu0 0.0
        %1052 = vmatpush2.msra.mxu0 0.0
        %1053 = vmatprep.subr.mxu0 0.0
        %1054 = vmatpush2.msra.mxu0 0.0
        %1055 = vmatprep.subr.mxu0 0.0
        %1056 = vmatpush2.msra.mxu0 0.0
        %1057 = vmatprep.subr.mxu0 0.0
        %1058 = vmatpush2.msra.mxu0 0.0
        %1059 = vmatprep.subr.mxu0 0.0
        %1060 = vmatpush2.msra.mxu0 0.0
        %1061 = vmatprep.subr.mxu0 0.0
        %1062 = vmatpush2.msra.mxu0 0.0
        %1063 = vmatprep.subr.mxu0 0.0
        %1064 = vmatpush2.msra.mxu0 0.0
        %1065 = vmatprep.subr.mxu0 0.0
        %1066 = vmatpush2.msra.mxu0 0.0
        %1067 = vmatprep.subr.mxu0 0.0
        %1068 = vmatpush2.msra.mxu0 0.0
        %1069 = vmatprep.subr.mxu0 0.0
        %1070 = vmatpush2.msra.mxu0 0.0
        %1071 = vmatprep.mubr.f32.mxu0 0.0
        %1072 = vmatmul.mubr.f32.gmra.mxu0 %v996
        %v1073 = vpop.f32.mrf.mxu0
        %v1074 = vadd.f32 0.0, %v1073
        %v1075 = vpop.f32.mrf.mxu0
        %v1076 = vadd.f32 0.0, %v1075
        %1077 = vmatprep.mubr.f32.mxu0 0.0
        %1078 = vmatmul.mubr.f32.gmra.mxu0 %v999
        %v1079 = vpop.f32.mrf.mxu0
        %v1080 = vadd.f32 0.0, %v1079
        %v1081 = vpop.f32.mrf.mxu0
        %v1082 = vadd.f32 0.0, %v1081
        %1083 = vmatprep.mubr.f32.mxu0 0.0
        %1084 = vmatmul.mubr.f32.gmra.mxu0 %v1002
        %v1085 = vpop.f32.mrf.mxu0
        %v1086 = vadd.f32 0.0, %v1085
        %v1087 = vpop.f32.mrf.mxu0
        %v1088 = vadd.f32 0.0, %v1087
        %1089 = vmatprep.mubr.f32.mxu0 0.0
        %1090 = vmatmul.mubr.f32.gmra.mxu0 %v1005
        %v1091 = vpop.f32.mrf.mxu0
        %v1092 = vadd.f32 0.0, %v1091
        %v1093 = vpop.f32.mrf.mxu0
        %v1094 = vadd.f32 0.0, %v1093
        %1095 = vdwg.mxu0
        %1096 = vmatprep.subr.mxu0 0.0
        %1097 = vmatpush1.msra.mxu0 0.0
        %1098 = vmatprep.subr.mxu0 0.0
        %1099 = vmatpush1.msra.mxu0 0.0
        %1100 = vmatprep.subr.mxu0 0.0
        %1101 = vmatpush1.msra.mxu0 0.0
        %1102 = vmatprep.subr.mxu0 0.0
        %1103 = vmatpush1.msra.mxu0 0.0
        %1104 = vmatprep.subr.mxu0 0.0
        %1105 = vmatpush1.msra.mxu0 0.0
        %1106 = vmatprep.subr.mxu0 0.0
        %1107 = vmatpush1.msra.mxu0 0.0
        %1108 = vmatprep.subr.mxu0 0.0
        %1109 = vmatpush1.msra.mxu0 0.0
        %1110 = vmatprep.subr.mxu0 0.0
        %1111 = vmatpush1.msra.mxu0 0.0
        %1112 = vmatprep.subr.mxu0 0.0
        %1113 = vmatpush1.msra.mxu0 0.0
        %1114 = vmatprep.subr.mxu0 0.0
        %1115 = vmatpush1.msra.mxu0 0.0
        %1116 = vmatprep.subr.mxu0 0.0
        %1117 = vmatpush1.msra.mxu0 0.0
        %1118 = vmatprep.subr.mxu0 0.0
        %1119 = vmatpush1.msra.mxu0 0.0
        %1120 = vmatprep.subr.mxu0 %v989
        %1121 = vmatpush1.msra.mxu0 %v988
        %1122 = vmatprep.subr.mxu0 %v981
        %1123 = vmatpush1.msra.mxu0 %v980
        %1124 = vmatprep.subr.mxu0 %v973
        %1125 = vmatpush1.msra.mxu0 %v972
        %1126 = vmatprep.subr.mxu0 %v965
        %1127 = vmatpush1.msra.mxu0 %v964
        %1128 = vmatprep.subr.mxu0 0.0
        %1129 = vmatpush2.msra.mxu0 0.0
        %1130 = vmatprep.subr.mxu0 0.0
        %1131 = vmatpush2.msra.mxu0 0.0
        %1132 = vmatprep.subr.mxu0 0.0
        %1133 = vmatpush2.msra.mxu0 0.0
        %1134 = vmatprep.subr.mxu0 0.0
        %1135 = vmatpush2.msra.mxu0 0.0
        %1136 = vmatprep.subr.mxu0 0.0
        %1137 = vmatpush2.msra.mxu0 0.0
        %1138 = vmatprep.subr.mxu0 0.0
        %1139 = vmatpush2.msra.mxu0 0.0
        %1140 = vmatprep.subr.mxu0 0.0
        %1141 = vmatpush2.msra.mxu0 0.0
        %1142 = vmatprep.subr.mxu0 0.0
        %1143 = vmatpush2.msra.mxu0 0.0
        %1144 = vmatprep.subr.mxu0 0.0
        %1145 = vmatpush2.msra.mxu0 0.0
        %1146 = vmatprep.subr.mxu0 0.0
        %1147 = vmatpush2.msra.mxu0 0.0
        %1148 = vmatprep.subr.mxu0 0.0
        %1149 = vmatpush2.msra.mxu0 0.0
        %1150 = vmatprep.subr.mxu0 0.0
        %1151 = vmatpush2.msra.mxu0 0.0
        %1152 = vmatprep.subr.mxu0 0.0
        %1153 = vmatpush2.msra.mxu0 0.0
        %1154 = vmatprep.subr.mxu0 0.0
        %1155 = vmatpush2.msra.mxu0 0.0
        %1156 = vmatprep.subr.mxu0 0.0
        %1157 = vmatpush2.msra.mxu0 0.0
        %1158 = vmatprep.subr.mxu0 0.0
        %1159 = vmatpush2.msra.mxu0 0.0
        %1160 = vmatprep.mubr.f32.mxu0 0.0
        %1161 = vmatmul.mubr.f32.gmra.mxu0 %v996
        %v1162 = vpop.f32.mrf.mxu0
        %v1163 = vadd.f32 0.0, %v1162
        %v1164 = vpop.f32.mrf.mxu0
        %v1165 = vadd.f32 0.0, %v1164
        %1166 = vmatprep.mubr.f32.mxu0 0.0
        %1167 = vmatmul.mubr.f32.gmra.mxu0 %v999
        %v1168 = vpop.f32.mrf.mxu0
        %v1169 = vadd.f32 0.0, %v1168
        %v1170 = vpop.f32.mrf.mxu0
        %v1171 = vadd.f32 0.0, %v1170
        %1172 = vmatprep.mubr.f32.mxu0 0.0
        %1173 = vmatmul.mubr.f32.gmra.mxu0 %v1002
        %v1174 = vpop.f32.mrf.mxu0
        %v1175 = vadd.f32 0.0, %v1174
        %v1176 = vpop.f32.mrf.mxu0
        %v1177 = vadd.f32 0.0, %v1176
        %1178 = vmatprep.mubr.f32.mxu0 0.0
        %1179 = vmatmul.mubr.f32.gmra.mxu0 %v1005
        %v1180 = vpop.f32.mrf.mxu0
        %v1181 = vadd.f32 0.0, %v1180
        %v1182 = vpop.f32.mrf.mxu0
        %v1183 = vadd.f32 0.0, %v1182
        %1184 = vdwg.mxu0
        %1185 = vmatprep.subr.mxu0 0.0
        %1186 = vmatpush1.msra.mxu0 0.0
        %1187 = vmatprep.subr.mxu0 0.0
        %1188 = vmatpush1.msra.mxu0 0.0
        %1189 = vmatprep.subr.mxu0 0.0
        %1190 = vmatpush1.msra.mxu0 0.0
        %1191 = vmatprep.subr.mxu0 0.0
        %1192 = vmatpush1.msra.mxu0 0.0
        %1193 = vmatprep.subr.mxu0 0.0
        %1194 = vmatpush1.msra.mxu0 0.0
        %1195 = vmatprep.subr.mxu0 0.0
        %1196 = vmatpush1.msra.mxu0 0.0
        %1197 = vmatprep.subr.mxu0 0.0
        %1198 = vmatpush1.msra.mxu0 0.0
        %1199 = vmatprep.subr.mxu0 0.0
        %1200 = vmatpush1.msra.mxu0 0.0
        %1201 = vmatprep.subr.mxu0 0.0
        %1202 = vmatpush1.msra.mxu0 0.0
        %1203 = vmatprep.subr.mxu0 0.0
        %1204 = vmatpush1.msra.mxu0 0.0
        %1205 = vmatprep.subr.mxu0 0.0
        %1206 = vmatpush1.msra.mxu0 0.0
        %1207 = vmatprep.subr.mxu0 0.0
        %1208 = vmatpush1.msra.mxu0 0.0
        %1209 = vmatprep.subr.mxu0 %v991
        %1210 = vmatpush1.msra.mxu0 %v990
        %1211 = vmatprep.subr.mxu0 %v983
        %1212 = vmatpush1.msra.mxu0 %v982
        %1213 = vmatprep.subr.mxu0 %v975
        %1214 = vmatpush1.msra.mxu0 %v974
        %1215 = vmatprep.subr.mxu0 %v967
        %1216 = vmatpush1.msra.mxu0 %v966
        %1217 = vmatprep.subr.mxu0 0.0
        %1218 = vmatpush2.msra.mxu0 0.0
        %1219 = vmatprep.subr.mxu0 0.0
        %1220 = vmatpush2.msra.mxu0 0.0
        %1221 = vmatprep.subr.mxu0 0.0
        %1222 = vmatpush2.msra.mxu0 0.0
        %1223 = vmatprep.subr.mxu0 0.0
        %1224 = vmatpush2.msra.mxu0 0.0
        %1225 = vmatprep.subr.mxu0 0.0
        %1226 = vmatpush2.msra.mxu0 0.0
        %1227 = vmatprep.subr.mxu0 0.0
        %1228 = vmatpush2.msra.mxu0 0.0
        %1229 = vmatprep.subr.mxu0 0.0
        %1230 = vmatpush2.msra.mxu0 0.0
        %1231 = vmatprep.subr.mxu0 0.0
        %1232 = vmatpush2.msra.mxu0 0.0
        %1233 = vmatprep.subr.mxu0 0.0
        %1234 = vmatpush2.msra.mxu0 0.0
        %1235 = vmatprep.subr.mxu0 0.0
        %1236 = vmatpush2.msra.mxu0 0.0
        %1237 = vmatprep.subr.mxu0 0.0
        %1238 = vmatpush2.msra.mxu0 0.0
        %1239 = vmatprep.subr.mxu0 0.0
        %1240 = vmatpush2.msra.mxu0 0.0
        %1241 = vmatprep.subr.mxu0 0.0
        %1242 = vmatpush2.msra.mxu0 0.0
        %1243 = vmatprep.subr.mxu0 0.0
        %1244 = vmatpush2.msra.mxu0 0.0
        %1245 = vmatprep.subr.mxu0 0.0
        %1246 = vmatpush2.msra.mxu0 0.0
        %1247 = vmatprep.subr.mxu0 0.0
        %1248 = vmatpush2.msra.mxu0 0.0
        %1249 = vmatprep.mubr.f32.mxu0 0.0
        %1250 = vmatmul.mubr.f32.gmra.mxu0 %v996
        %v1251 = vpop.f32.mrf.mxu0
        %v1252 = vadd.f32 0.0, %v1251
        %v1253 = vpop.f32.mrf.mxu0
        %v1254 = vadd.f32 0.0, %v1253
        %1255 = vmatprep.mubr.f32.mxu0 0.0
        %1256 = vmatmul.mubr.f32.gmra.mxu0 %v999
        %v1257 = vpop.f32.mrf.mxu0
        %v1258 = vadd.f32 0.0, %v1257
        %v1259 = vpop.f32.mrf.mxu0
        %v1260 = vadd.f32 0.0, %v1259
        %1261 = vmatprep.mubr.f32.mxu0 0.0
        %1262 = vmatmul.mubr.f32.gmra.mxu0 %v1002
        %v1263 = vpop.f32.mrf.mxu0
        %v1264 = vadd.f32 0.0, %v1263
        %v1265 = vpop.f32.mrf.mxu0
        %v1266 = vadd.f32 0.0, %v1265
        %1267 = vmatprep.mubr.f32.mxu0 0.0
        %1268 = vmatmul.mubr.f32.gmra.mxu0 %v1005
        %v1269 = vpop.f32.mrf.mxu0
        %v1270 = vadd.f32 0.0, %v1269
        %v1271 = vpop.f32.mrf.mxu0
        %v1272 = vadd.f32 0.0, %v1271
        %1273 = vdwg.mxu0
        %1274 = vmatprep.subr.mxu0 0.0
        %1275 = vmatpush1.msra.mxu0 0.0
        %1276 = vmatprep.subr.mxu0 0.0
        %1277 = vmatpush1.msra.mxu0 0.0
        %1278 = vmatprep.subr.mxu0 0.0
        %1279 = vmatpush1.msra.mxu0 0.0
        %1280 = vmatprep.subr.mxu0 0.0
        %1281 = vmatpush1.msra.mxu0 0.0
        %1282 = vmatprep.subr.mxu0 0.0
        %1283 = vmatpush1.msra.mxu0 0.0
        %1284 = vmatprep.subr.mxu0 0.0
        %1285 = vmatpush1.msra.mxu0 0.0
        %1286 = vmatprep.subr.mxu0 0.0
        %1287 = vmatpush1.msra.mxu0 0.0
        %1288 = vmatprep.subr.mxu0 0.0
        %1289 = vmatpush1.msra.mxu0 0.0
        %1290 = vmatprep.subr.mxu0 0.0
        %1291 = vmatpush1.msra.mxu0 0.0
        %1292 = vmatprep.subr.mxu0 0.0
        %1293 = vmatpush1.msra.mxu0 0.0
        %1294 = vmatprep.subr.mxu0 0.0
        %1295 = vmatpush1.msra.mxu0 0.0
        %1296 = vmatprep.subr.mxu0 0.0
        %1297 = vmatpush1.msra.mxu0 0.0
        %1298 = vmatprep.subr.mxu0 %v993
        %1299 = vmatpush1.msra.mxu0 %v992
        %1300 = vmatprep.subr.mxu0 %v985
        %1301 = vmatpush1.msra.mxu0 %v984
        %1302 = vmatprep.subr.mxu0 %v977
        %1303 = vmatpush1.msra.mxu0 %v976
        %1304 = vmatprep.subr.mxu0 %v969
        %1305 = vmatpush1.msra.mxu0 %v968
        %1306 = vmatprep.subr.mxu0 0.0
        %1307 = vmatpush2.msra.mxu0 0.0
        %1308 = vmatprep.subr.mxu0 0.0
        %1309 = vmatpush2.msra.mxu0 0.0
        %1310 = vmatprep.subr.mxu0 0.0
        %1311 = vmatpush2.msra.mxu0 0.0
        %1312 = vmatprep.subr.mxu0 0.0
        %1313 = vmatpush2.msra.mxu0 0.0
        %1314 = vmatprep.subr.mxu0 0.0
        %1315 = vmatpush2.msra.mxu0 0.0
        %1316 = vmatprep.subr.mxu0 0.0
        %1317 = vmatpush2.msra.mxu0 0.0
        %1318 = vmatprep.subr.mxu0 0.0
        %1319 = vmatpush2.msra.mxu0 0.0
        %1320 = vmatprep.subr.mxu0 0.0
        %1321 = vmatpush2.msra.mxu0 0.0
        %1322 = vmatprep.subr.mxu0 0.0
        %1323 = vmatpush2.msra.mxu0 0.0
        %1324 = vmatprep.subr.mxu0 0.0
        %1325 = vmatpush2.msra.mxu0 0.0
        %1326 = vmatprep.subr.mxu0 0.0
        %1327 = vmatpush2.msra.mxu0 0.0
        %1328 = vmatprep.subr.mxu0 0.0
        %1329 = vmatpush2.msra.mxu0 0.0
        %1330 = vmatprep.subr.mxu0 0.0
        %1331 = vmatpush2.msra.mxu0 0.0
        %1332 = vmatprep.subr.mxu0 0.0
        %1333 = vmatpush2.msra.mxu0 0.0
        %1334 = vmatprep.subr.mxu0 0.0
        %1335 = vmatpush2.msra.mxu0 0.0
        %1336 = vmatprep.subr.mxu0 0.0
        %1337 = vmatpush2.msra.mxu0 0.0
        %1338 = vmatprep.mubr.f32.mxu0 0.0
        %1339 = vmatmul.mubr.f32.gmra.mxu0 %v996
        %v1340 = vpop.f32.mrf.mxu0
        %v1341 = vadd.f32 0.0, %v1340
        %v1342 = vpop.f32.mrf.mxu0
        %v1343 = vadd.f32 0.0, %v1342
        %1344 = vmatprep.mubr.f32.mxu0 0.0
        %1345 = vmatmul.mubr.f32.gmra.mxu0 %v999
        %v1346 = vpop.f32.mrf.mxu0
        %v1347 = vadd.f32 0.0, %v1346
        %v1348 = vpop.f32.mrf.mxu0
        %v1349 = vadd.f32 0.0, %v1348
        %1350 = vmatprep.mubr.f32.mxu0 0.0
        %1351 = vmatmul.mubr.f32.gmra.mxu0 %v1002
        %v1352 = vpop.f32.mrf.mxu0
        %v1353 = vadd.f32 0.0, %v1352
        %v1354 = vpop.f32.mrf.mxu0
        %v1355 = vadd.f32 0.0, %v1354
        %1356 = vmatprep.mubr.f32.mxu0 0.0
        %1357 = vmatmul.mubr.f32.gmra.mxu0 %v1005
        %v1358 = vpop.f32.mrf.mxu0
        %v1359 = vadd.f32 0.0, %v1358
        %v1360 = vpop.f32.mrf.mxu0
        %v1361 = vadd.f32 0.0, %v1360
        %1362 = vdwg.mxu0
        %v1364 = vsel %vm994, %v293, 0
        %v1367 = vsel %vm994, %v294, 0
        %v1370 = vsel %vm994, %v295, 0
        %v1373 = vsel %vm994, %v296, 0
        %1375 = vmatprep.subr.mxu0 0.0
        %1376 = vmatpush1.msra.mxu0 0.0
        %1377 = vmatprep.subr.mxu0 0.0
        %1378 = vmatpush1.msra.mxu0 0.0
        %1379 = vmatprep.subr.mxu0 0.0
        %1380 = vmatpush1.msra.mxu0 0.0
        %1381 = vmatprep.subr.mxu0 0.0
        %1382 = vmatpush1.msra.mxu0 0.0
        %1383 = vmatprep.subr.mxu0 0.0
        %1384 = vmatpush1.msra.mxu0 0.0
        %1385 = vmatprep.subr.mxu0 0.0
        %1386 = vmatpush1.msra.mxu0 0.0
        %1387 = vmatprep.subr.mxu0 0.0
        %1388 = vmatpush1.msra.mxu0 0.0
        %1389 = vmatprep.subr.mxu0 0.0
        %1390 = vmatpush1.msra.mxu0 0.0
        %1391 = vmatprep.subr.mxu0 0.0
        %1392 = vmatpush1.msra.mxu0 0.0
        %1393 = vmatprep.subr.mxu0 0.0
        %1394 = vmatpush1.msra.mxu0 0.0
        %1395 = vmatprep.subr.mxu0 0.0
        %1396 = vmatpush1.msra.mxu0 0.0
        %1397 = vmatprep.subr.mxu0 0.0
        %1398 = vmatpush1.msra.mxu0 0.0
        %1399 = vmatprep.subr.mxu0 %v891
        %1400 = vmatpush1.msra.mxu0 %v890
        %1401 = vmatprep.subr.mxu0 %v883
        %1402 = vmatpush1.msra.mxu0 %v882
        %1403 = vmatprep.subr.mxu0 %v875
        %1404 = vmatpush1.msra.mxu0 %v874
        %1405 = vmatprep.subr.mxu0 %v867
        %1406 = vmatpush1.msra.mxu0 %v866
        %1407 = vmatprep.subr.mxu0 0.0
        %1408 = vmatpush2.msra.mxu0 0.0
        %1409 = vmatprep.subr.mxu0 0.0
        %1410 = vmatpush2.msra.mxu0 0.0
        %1411 = vmatprep.subr.mxu0 0.0
        %1412 = vmatpush2.msra.mxu0 0.0
        %1413 = vmatprep.subr.mxu0 0.0
        %1414 = vmatpush2.msra.mxu0 0.0
        %1415 = vmatprep.subr.mxu0 0.0
        %1416 = vmatpush2.msra.mxu0 0.0
        %1417 = vmatprep.subr.mxu0 0.0
        %1418 = vmatpush2.msra.mxu0 0.0
        %1419 = vmatprep.subr.mxu0 0.0
        %1420 = vmatpush2.msra.mxu0 0.0
        %1421 = vmatprep.subr.mxu0 0.0
        %1422 = vmatpush2.msra.mxu0 0.0
        %1423 = vmatprep.subr.mxu0 0.0
        %1424 = vmatpush2.msra.mxu0 0.0
        %1425 = vmatprep.subr.mxu0 0.0
        %1426 = vmatpush2.msra.mxu0 0.0
        %1427 = vmatprep.subr.mxu0 0.0
        %1428 = vmatpush2.msra.mxu0 0.0
        %1429 = vmatprep.subr.mxu0 0.0
        %1430 = vmatpush2.msra.mxu0 0.0
        %1431 = vmatprep.subr.mxu0 0.0
        %1432 = vmatpush2.msra.mxu0 0.0
        %1433 = vmatprep.subr.mxu0 0.0
        %1434 = vmatpush2.msra.mxu0 0.0
        %1435 = vmatprep.subr.mxu0 0.0
        %1436 = vmatpush2.msra.mxu0 0.0
        %1437 = vmatprep.subr.mxu0 0.0
        %1438 = vmatpush2.msra.mxu0 0.0
        %1439 = vmatprep.mubr.f32.mxu0 0.0
        %1440 = vmatmul.mubr.f32.gmra.mxu0 %v1364
        %v1441 = vpop.f32.mrf.mxu0
        %v1442 = vadd.f32 %v1074, %v1441
        %v1443 = vpop.f32.mrf.mxu0
        %v1444 = vadd.f32 %v1076, %v1443
        %1445 = vmatprep.mubr.f32.mxu0 0.0
        %1446 = vmatmul.mubr.f32.gmra.mxu0 %v1367
        %v1447 = vpop.f32.mrf.mxu0
        %v1448 = vadd.f32 %v1080, %v1447
        %v1449 = vpop.f32.mrf.mxu0
        %v1450 = vadd.f32 %v1082, %v1449
        %1451 = vmatprep.mubr.f32.mxu0 0.0
        %1452 = vmatmul.mubr.f32.gmra.mxu0 %v1370
        %v1453 = vpop.f32.mrf.mxu0
        %v1454 = vadd.f32 %v1086, %v1453
        %v1455 = vpop.f32.mrf.mxu0
        %v1456 = vadd.f32 %v1088, %v1455
        %1457 = vmatprep.mubr.f32.mxu0 0.0
        %1458 = vmatmul.mubr.f32.gmra.mxu0 %v1373
        %v1459 = vpop.f32.mrf.mxu0
        %v1460 = vadd.f32 %v1092, %v1459
        %v1461 = vpop.f32.mrf.mxu0
        %v1462 = vadd.f32 %v1094, %v1461
        %1463 = vdwg.mxu0
        %1464 = vmatprep.subr.mxu0 0.0
        %1465 = vmatpush1.msra.mxu0 0.0
        %1466 = vmatprep.subr.mxu0 0.0
        %1467 = vmatpush1.msra.mxu0 0.0
        %1468 = vmatprep.subr.mxu0 0.0
        %1469 = vmatpush1.msra.mxu0 0.0
        %1470 = vmatprep.subr.mxu0 0.0
        %1471 = vmatpush1.msra.mxu0 0.0
        %1472 = vmatprep.subr.mxu0 0.0
        %1473 = vmatpush1.msra.mxu0 0.0
        %1474 = vmatprep.subr.mxu0 0.0
        %1475 = vmatpush1.msra.mxu0 0.0
        %1476 = vmatprep.subr.mxu0 0.0
        %1477 = vmatpush1.msra.mxu0 0.0
        %1478 = vmatprep.subr.mxu0 0.0
        %1479 = vmatpush1.msra.mxu0 0.0
        %1480 = vmatprep.subr.mxu0 0.0
        %1481 = vmatpush1.msra.mxu0 0.0
        %1482 = vmatprep.subr.mxu0 0.0
        %1483 = vmatpush1.msra.mxu0 0.0
        %1484 = vmatprep.subr.mxu0 0.0
        %1485 = vmatpush1.msra.mxu0 0.0
        %1486 = vmatprep.subr.mxu0 0.0
        %1487 = vmatpush1.msra.mxu0 0.0
        %1488 = vmatprep.subr.mxu0 %v893
        %1489 = vmatpush1.msra.mxu0 %v892
        %1490 = vmatprep.subr.mxu0 %v885
        %1491 = vmatpush1.msra.mxu0 %v884
        %1492 = vmatprep.subr.mxu0 %v877
        %1493 = vmatpush1.msra.mxu0 %v876
        %1494 = vmatprep.subr.mxu0 %v869
        %1495 = vmatpush1.msra.mxu0 %v868
        %1496 = vmatprep.subr.mxu0 0.0
        %1497 = vmatpush2.msra.mxu0 0.0
        %1498 = vmatprep.subr.mxu0 0.0
        %1499 = vmatpush2.msra.mxu0 0.0
        %1500 = vmatprep.subr.mxu0 0.0
        %1501 = vmatpush2.msra.mxu0 0.0
        %1502 = vmatprep.subr.mxu0 0.0
        %1503 = vmatpush2.msra.mxu0 0.0
        %1504 = vmatprep.subr.mxu0 0.0
        %1505 = vmatpush2.msra.mxu0 0.0
        %1506 = vmatprep.subr.mxu0 0.0
        %1507 = vmatpush2.msra.mxu0 0.0
        %1508 = vmatprep.subr.mxu0 0.0
        %1509 = vmatpush2.msra.mxu0 0.0
        %1510 = vmatprep.subr.mxu0 0.0
        %1511 = vmatpush2.msra.mxu0 0.0
        %1512 = vmatprep.subr.mxu0 0.0
        %1513 = vmatpush2.msra.mxu0 0.0
        %1514 = vmatprep.subr.mxu0 0.0
        %1515 = vmatpush2.msra.mxu0 0.0
        %1516 = vmatprep.subr.mxu0 0.0
        %1517 = vmatpush2.msra.mxu0 0.0
        %1518 = vmatprep.subr.mxu0 0.0
        %1519 = vmatpush2.msra.mxu0 0.0
        %1520 = vmatprep.subr.mxu0 0.0
        %1521 = vmatpush2.msra.mxu0 0.0
        %1522 = vmatprep.subr.mxu0 0.0
        %1523 = vmatpush2.msra.mxu0 0.0
        %1524 = vmatprep.subr.mxu0 0.0
        %1525 = vmatpush2.msra.mxu0 0.0
        %1526 = vmatprep.subr.mxu0 0.0
        %1527 = vmatpush2.msra.mxu0 0.0
        %1528 = vmatprep.mubr.f32.mxu0 0.0
        %1529 = vmatmul.mubr.f32.gmra.mxu0 %v1364
        %v1530 = vpop.f32.mrf.mxu0
        %v1531 = vadd.f32 %v1163, %v1530
        %v1532 = vpop.f32.mrf.mxu0
        %v1533 = vadd.f32 %v1165, %v1532
        %1534 = vmatprep.mubr.f32.mxu0 0.0
        %1535 = vmatmul.mubr.f32.gmra.mxu0 %v1367
        %v1536 = vpop.f32.mrf.mxu0
        %v1537 = vadd.f32 %v1169, %v1536
        %v1538 = vpop.f32.mrf.mxu0
        %v1539 = vadd.f32 %v1171, %v1538
        %1540 = vmatprep.mubr.f32.mxu0 0.0
        %1541 = vmatmul.mubr.f32.gmra.mxu0 %v1370
        %v1542 = vpop.f32.mrf.mxu0
        %v1543 = vadd.f32 %v1175, %v1542
        %v1544 = vpop.f32.mrf.mxu0
        %v1545 = vadd.f32 %v1177, %v1544
        %1546 = vmatprep.mubr.f32.mxu0 0.0
        %1547 = vmatmul.mubr.f32.gmra.mxu0 %v1373
        %v1548 = vpop.f32.mrf.mxu0
        %v1549 = vadd.f32 %v1181, %v1548
        %v1550 = vpop.f32.mrf.mxu0
        %v1551 = vadd.f32 %v1183, %v1550
        %1552 = vdwg.mxu0
        %1553 = vmatprep.subr.mxu0 0.0
        %1554 = vmatpush1.msra.mxu0 0.0
        %1555 = vmatprep.subr.mxu0 0.0
        %1556 = vmatpush1.msra.mxu0 0.0
        %1557 = vmatprep.subr.mxu0 0.0
        %1558 = vmatpush1.msra.mxu0 0.0
        %1559 = vmatprep.subr.mxu0 0.0
        %1560 = vmatpush1.msra.mxu0 0.0
        %1561 = vmatprep.subr.mxu0 0.0
        %1562 = vmatpush1.msra.mxu0 0.0
        %1563 = vmatprep.subr.mxu0 0.0
        %1564 = vmatpush1.msra.mxu0 0.0
        %1565 = vmatprep.subr.mxu0 0.0
        %1566 = vmatpush1.msra.mxu0 0.0
        %1567 = vmatprep.subr.mxu0 0.0
        %1568 = vmatpush1.msra.mxu0 0.0
        %1569 = vmatprep.subr.mxu0 0.0
        %1570 = vmatpush1.msra.mxu0 0.0
        %1571 = vmatprep.subr.mxu0 0.0
        %1572 = vmatpush1.msra.mxu0 0.0
        %1573 = vmatprep.subr.mxu0 0.0
        %1574 = vmatpush1.msra.mxu0 0.0
        %1575 = vmatprep.subr.mxu0 0.0
        %1576 = vmatpush1.msra.mxu0 0.0
        %1577 = vmatprep.subr.mxu0 %v895
        %1578 = vmatpush1.msra.mxu0 %v894
        %1579 = vmatprep.subr.mxu0 %v887
        %1580 = vmatpush1.msra.mxu0 %v886
        %1581 = vmatprep.subr.mxu0 %v879
        %1582 = vmatpush1.msra.mxu0 %v878
        %1583 = vmatprep.subr.mxu0 %v871
        %1584 = vmatpush1.msra.mxu0 %v870
        %1585 = vmatprep.subr.mxu0 0.0
        %1586 = vmatpush2.msra.mxu0 0.0
        %1587 = vmatprep.subr.mxu0 0.0
        %1588 = vmatpush2.msra.mxu0 0.0
        %1589 = vmatprep.subr.mxu0 0.0
        %1590 = vmatpush2.msra.mxu0 0.0
        %1591 = vmatprep.subr.mxu0 0.0
        %1592 = vmatpush2.msra.mxu0 0.0
        %1593 = vmatprep.subr.mxu0 0.0
        %1594 = vmatpush2.msra.mxu0 0.0
        %1595 = vmatprep.subr.mxu0 0.0
        %1596 = vmatpush2.msra.mxu0 0.0
        %1597 = vmatprep.subr.mxu0 0.0
        %1598 = vmatpush2.msra.mxu0 0.0
        %1599 = vmatprep.subr.mxu0 0.0
        %1600 = vmatpush2.msra.mxu0 0.0
        %1601 = vmatprep.subr.mxu0 0.0
        %1602 = vmatpush2.msra.mxu0 0.0
        %1603 = vmatprep.subr.mxu0 0.0
        %1604 = vmatpush2.msra.mxu0 0.0
        %1605 = vmatprep.subr.mxu0 0.0
        %1606 = vmatpush2.msra.mxu0 0.0
        %1607 = vmatprep.subr.mxu0 0.0
        %1608 = vmatpush2.msra.mxu0 0.0
        %1609 = vmatprep.subr.mxu0 0.0
        %1610 = vmatpush2.msra.mxu0 0.0
        %1611 = vmatprep.subr.mxu0 0.0
        %1612 = vmatpush2.msra.mxu0 0.0
        %1613 = vmatprep.subr.mxu0 0.0
        %1614 = vmatpush2.msra.mxu0 0.0
        %1615 = vmatprep.subr.mxu0 0.0
        %1616 = vmatpush2.msra.mxu0 0.0
        %1617 = vmatprep.mubr.f32.mxu0 0.0
        %1618 = vmatmul.mubr.f32.gmra.mxu0 %v1364
        %v1619 = vpop.f32.mrf.mxu0
        %v1620 = vadd.f32 %v1252, %v1619
        %v1621 = vpop.f32.mrf.mxu0
        %v1622 = vadd.f32 %v1254, %v1621
        %1623 = vmatprep.mubr.f32.mxu0 0.0
        %1624 = vmatmul.mubr.f32.gmra.mxu0 %v1367
        %v1625 = vpop.f32.mrf.mxu0
        %v1626 = vadd.f32 %v1258, %v1625
        %v1627 = vpop.f32.mrf.mxu0
        %v1628 = vadd.f32 %v1260, %v1627
        %1629 = vmatprep.mubr.f32.mxu0 0.0
        %1630 = vmatmul.mubr.f32.gmra.mxu0 %v1370
        %v1631 = vpop.f32.mrf.mxu0
        %v1632 = vadd.f32 %v1264, %v1631
        %v1633 = vpop.f32.mrf.mxu0
        %v1634 = vadd.f32 %v1266, %v1633
        %1635 = vmatprep.mubr.f32.mxu0 0.0
        %1636 = vmatmul.mubr.f32.gmra.mxu0 %v1373
        %v1637 = vpop.f32.mrf.mxu0
        %v1638 = vadd.f32 %v1270, %v1637
        %v1639 = vpop.f32.mrf.mxu0
        %v1640 = vadd.f32 %v1272, %v1639
        %1641 = vdwg.mxu0
        %1642 = vmatprep.subr.mxu0 0.0
        %1643 = vmatpush1.msra.mxu0 0.0
        %1644 = vmatprep.subr.mxu0 0.0
        %1645 = vmatpush1.msra.mxu0 0.0
        %1646 = vmatprep.subr.mxu0 0.0
        %1647 = vmatpush1.msra.mxu0 0.0
        %1648 = vmatprep.subr.mxu0 0.0
        %1649 = vmatpush1.msra.mxu0 0.0
        %1650 = vmatprep.subr.mxu0 0.0
        %1651 = vmatpush1.msra.mxu0 0.0
        %1652 = vmatprep.subr.mxu0 0.0
        %1653 = vmatpush1.msra.mxu0 0.0
        %1654 = vmatprep.subr.mxu0 0.0
        %1655 = vmatpush1.msra.mxu0 0.0
        %1656 = vmatprep.subr.mxu0 0.0
        %1657 = vmatpush1.msra.mxu0 0.0
        %1658 = vmatprep.subr.mxu0 0.0
        %1659 = vmatpush1.msra.mxu0 0.0
        %1660 = vmatprep.subr.mxu0 0.0
        %1661 = vmatpush1.msra.mxu0 0.0
        %1662 = vmatprep.subr.mxu0 0.0
        %1663 = vmatpush1.msra.mxu0 0.0
        %1664 = vmatprep.subr.mxu0 0.0
        %1665 = vmatpush1.msra.mxu0 0.0
        %1666 = vmatprep.subr.mxu0 %v897
        %1667 = vmatpush1.msra.mxu0 %v896
        %1668 = vmatprep.subr.mxu0 %v889
        %1669 = vmatpush1.msra.mxu0 %v888
        %1670 = vmatprep.subr.mxu0 %v881
        %1671 = vmatpush1.msra.mxu0 %v880
        %1672 = vmatprep.subr.mxu0 %v873
        %1673 = vmatpush1.msra.mxu0 %v872
        %1674 = vmatprep.subr.mxu0 0.0
        %1675 = vmatpush2.msra.mxu0 0.0
        %1676 = vmatprep.subr.mxu0 0.0
        %1677 = vmatpush2.msra.mxu0 0.0
        %1678 = vmatprep.subr.mxu0 0.0
        %1679 = vmatpush2.msra.mxu0 0.0
        %1680 = vmatprep.subr.mxu0 0.0
        %1681 = vmatpush2.msra.mxu0 0.0
        %1682 = vmatprep.subr.mxu0 0.0
        %1683 = vmatpush2.msra.mxu0 0.0
        %1684 = vmatprep.subr.mxu0 0.0
        %1685 = vmatpush2.msra.mxu0 0.0
        %1686 = vmatprep.subr.mxu0 0.0
        %1687 = vmatpush2.msra.mxu0 0.0
        %1688 = vmatprep.subr.mxu0 0.0
        %1689 = vmatpush2.msra.mxu0 0.0
        %1690 = vmatprep.subr.mxu0 0.0
        %1691 = vmatpush2.msra.mxu0 0.0
        %1692 = vmatprep.subr.mxu0 0.0
        %1693 = vmatpush2.msra.mxu0 0.0
        %1694 = vmatprep.subr.mxu0 0.0
        %1695 = vmatpush2.msra.mxu0 0.0
        %1696 = vmatprep.subr.mxu0 0.0
        %1697 = vmatpush2.msra.mxu0 0.0
        %1698 = vmatprep.subr.mxu0 0.0
        %1699 = vmatpush2.msra.mxu0 0.0
        %1700 = vmatprep.subr.mxu0 0.0
        %1701 = vmatpush2.msra.mxu0 0.0
        %1702 = vmatprep.subr.mxu0 0.0
        %1703 = vmatpush2.msra.mxu0 0.0
        %1704 = vmatprep.subr.mxu0 0.0
        %1705 = vmatpush2.msra.mxu0 0.0
        %1706 = vmatprep.mubr.f32.mxu0 0.0
        %1707 = vmatmul.mubr.f32.gmra.mxu0 %v1364
        %v1708 = vpop.f32.mrf.mxu0
        %v1709 = vadd.f32 %v1341, %v1708
        %v1710 = vpop.f32.mrf.mxu0
        %v1711 = vadd.f32 %v1343, %v1710
        %1712 = vmatprep.mubr.f32.mxu0 0.0
        %1713 = vmatmul.mubr.f32.gmra.mxu0 %v1367
        %v1714 = vpop.f32.mrf.mxu0
        %v1715 = vadd.f32 %v1347, %v1714
        %v1716 = vpop.f32.mrf.mxu0
        %v1717 = vadd.f32 %v1349, %v1716
        %1718 = vmatprep.mubr.f32.mxu0 0.0
        %1719 = vmatmul.mubr.f32.gmra.mxu0 %v1370
        %v1720 = vpop.f32.mrf.mxu0
        %v1721 = vadd.f32 %v1353, %v1720
        %v1722 = vpop.f32.mrf.mxu0
        %v1723 = vadd.f32 %v1355, %v1722
        %1724 = vmatprep.mubr.f32.mxu0 0.0
        %1725 = vmatmul.mubr.f32.gmra.mxu0 %v1373
        %v1726 = vpop.f32.mrf.mxu0
        %v1727 = vadd.f32 %v1359, %v1726
        %v1728 = vpop.f32.mrf.mxu0
        %v1729 = vadd.f32 %v1361, %v1728
        %1730 = vdwg.mxu0
        %1732 = vset.pattern.permute.xlu0 0
        %1733 = vperm.xlu0 %1732, %v301
        %v1734 = vpop.permute.xlu0 %1733
        %1737 = vset.pattern.permute.xlu0 0
        %1738 = vperm.xlu0 %1737, %v302
        %v1739 = vpop.permute.xlu0 %1738
        %1742 = vset.pattern.permute.xlu0 0
        %1743 = vperm.xlu0 %1742, %v303
        %v1744 = vpop.permute.xlu0 %1743
        %1747 = vset.pattern.permute.xlu0 0
        %1748 = vperm.xlu0 %1747, %v304
        %v1749 = vpop.permute.xlu0 %1748
        %v1751 = vadd.f32 %v1442, %v1734
        %v1752 = vadd.f32 %v1444, %v1734
        %v1753 = vadd.f32 %v1531, %v1734
        %v1754 = vadd.f32 %v1533, %v1734
        %v1755 = vadd.f32 %v1620, %v1734
        %v1756 = vadd.f32 %v1622, %v1734
        %v1757 = vadd.f32 %v1709, %v1734
        %v1758 = vadd.f32 %v1711, %v1734
        %v1759 = vadd.f32 %v1448, %v1739
        %v1760 = vadd.f32 %v1450, %v1739
        %v1761 = vadd.f32 %v1537, %v1739
        %v1762 = vadd.f32 %v1539, %v1739
        %v1763 = vadd.f32 %v1626, %v1739
        %v1764 = vadd.f32 %v1628, %v1739
        %v1765 = vadd.f32 %v1715, %v1739
        %v1766 = vadd.f32 %v1717, %v1739
        %v1767 = vadd.f32 %v1454, %v1744
        %v1768 = vadd.f32 %v1456, %v1744
        %v1769 = vadd.f32 %v1543, %v1744
        %v1770 = vadd.f32 %v1545, %v1744
        %v1771 = vadd.f32 %v1632, %v1744
        %v1772 = vadd.f32 %v1634, %v1744
        %v1773 = vadd.f32 %v1721, %v1744
        %v1774 = vadd.f32 %v1723, %v1744
        %v1775 = vadd.f32 %v1460, %v1749
        %v1776 = vadd.f32 %v1462, %v1749
        %v1777 = vadd.f32 %v1549, %v1749
        %v1778 = vadd.f32 %v1551, %v1749
        %v1779 = vadd.f32 %v1638, %v1749
        %v1780 = vadd.f32 %v1640, %v1749
        %v1781 = vadd.f32 %v1727, %v1749
        %v1782 = vadd.f32 %v1729, %v1749
        %vm1783 = vcmp.gt.f32.partialorder %v1751, 0.0
        %vm1784 = vcmp.gt.f32.partialorder %v1752, 0.0
        %vm1785 = vcmp.gt.f32.partialorder %v1753, 0.0
        %vm1786 = vcmp.gt.f32.partialorder %v1754, 0.0
        %vm1787 = vcmp.gt.f32.partialorder %v1755, 0.0
        %vm1788 = vcmp.gt.f32.partialorder %v1756, 0.0
        %vm1789 = vcmp.gt.f32.partialorder %v1757, 0.0
        %vm1790 = vcmp.gt.f32.partialorder %v1758, 0.0
        %vm1791 = vcmp.gt.f32.partialorder %v1759, 0.0
        %vm1792 = vcmp.gt.f32.partialorder %v1760, 0.0
        %vm1793 = vcmp.gt.f32.partialorder %v1761, 0.0
        %vm1794 = vcmp.gt.f32.partialorder %v1762, 0.0
        %vm1795 = vcmp.gt.f32.partialorder %v1763, 0.0
        %vm1796 = vcmp.gt.f32.partialorder %v1764, 0.0
        %vm1797 = vcmp.gt.f32.partialorder %v1765, 0.0
        %vm1798 = vcmp.gt.f32.partialorder %v1766, 0.0
        %vm1799 = vcmp.gt.f32.partialorder %v1767, 0.0
        %vm1800 = vcmp.gt.f32.partialorder %v1768, 0.0
        %vm1801 = vcmp.gt.f32.partialorder %v1769, 0.0
        %vm1802 = vcmp.gt.f32.partialorder %v1770, 0.0
        %vm1803 = vcmp.gt.f32.partialorder %v1771, 0.0
        %vm1804 = vcmp.gt.f32.partialorder %v1772, 0.0
        %vm1805 = vcmp.gt.f32.partialorder %v1773, 0.0
        %vm1806 = vcmp.gt.f32.partialorder %v1774, 0.0
        %vm1807 = vcmp.gt.f32.partialorder %v1775, 0.0
        %vm1808 = vcmp.gt.f32.partialorder %v1776, 0.0
        %vm1809 = vcmp.gt.f32.partialorder %v1777, 0.0
        %vm1810 = vcmp.gt.f32.partialorder %v1778, 0.0
        %vm1811 = vcmp.gt.f32.partialorder %v1779, 0.0
        %vm1812 = vcmp.gt.f32.partialorder %v1780, 0.0
        %vm1813 = vcmp.gt.f32.partialorder %v1781, 0.0
        %vm1814 = vcmp.gt.f32.partialorder %v1782, 0.0
        %v1815 = vmul.f32 %v1751, 0.01
        %v1816 = vmul.f32 %v1752, 0.01
        %v1817 = vmul.f32 %v1753, 0.01
        %v1818 = vmul.f32 %v1754, 0.01
        %v1819 = vmul.f32 %v1755, 0.01
        %v1820 = vmul.f32 %v1756, 0.01
        %v1821 = vmul.f32 %v1757, 0.01
        %v1822 = vmul.f32 %v1758, 0.01
        %v1823 = vmul.f32 %v1759, 0.01
        %v1824 = vmul.f32 %v1760, 0.01
        %v1825 = vmul.f32 %v1761, 0.01
        %v1826 = vmul.f32 %v1762, 0.01
        %v1827 = vmul.f32 %v1763, 0.01
        %v1828 = vmul.f32 %v1764, 0.01
        %v1829 = vmul.f32 %v1765, 0.01
        %v1830 = vmul.f32 %v1766, 0.01
        %v1831 = vmul.f32 %v1767, 0.01
        %v1832 = vmul.f32 %v1768, 0.01
        %v1833 = vmul.f32 %v1769, 0.01
        %v1834 = vmul.f32 %v1770, 0.01
        %v1835 = vmul.f32 %v1771, 0.01
        %v1836 = vmul.f32 %v1772, 0.01
        %v1837 = vmul.f32 %v1773, 0.01
        %v1838 = vmul.f32 %v1774, 0.01
        %v1839 = vmul.f32 %v1775, 0.01
        %v1840 = vmul.f32 %v1776, 0.01
        %v1841 = vmul.f32 %v1777, 0.01
        %v1842 = vmul.f32 %v1778, 0.01
        %v1843 = vmul.f32 %v1779, 0.01
        %v1844 = vmul.f32 %v1780, 0.01
        %v1845 = vmul.f32 %v1781, 0.01
        %v1846 = vmul.f32 %v1782, 0.01
        %v1847 = vsel %vm1783, %v1751, %v1815
        %v1848 = vsel %vm1784, %v1752, %v1816
        %v1849 = vsel %vm1785, %v1753, %v1817
        %v1850 = vsel %vm1786, %v1754, %v1818
        %v1851 = vsel %vm1787, %v1755, %v1819
        %v1852 = vsel %vm1788, %v1756, %v1820
        %v1853 = vsel %vm1789, %v1757, %v1821
        %v1854 = vsel %vm1790, %v1758, %v1822
        %v1855 = vsel %vm1791, %v1759, %v1823
        %v1856 = vsel %vm1792, %v1760, %v1824
        %v1857 = vsel %vm1793, %v1761, %v1825
        %v1858 = vsel %vm1794, %v1762, %v1826
        %v1859 = vsel %vm1795, %v1763, %v1827
        %v1860 = vsel %vm1796, %v1764, %v1828
        %v1861 = vsel %vm1797, %v1765, %v1829
        %v1862 = vsel %vm1798, %v1766, %v1830
        %v1863 = vsel %vm1799, %v1767, %v1831
        %v1864 = vsel %vm1800, %v1768, %v1832
        %v1865 = vsel %vm1801, %v1769, %v1833
        %v1866 = vsel %vm1802, %v1770, %v1834
        %v1867 = vsel %vm1803, %v1771, %v1835
        %v1868 = vsel %vm1804, %v1772, %v1836
        %v1869 = vsel %vm1805, %v1773, %v1837
        %v1870 = vsel %vm1806, %v1774, %v1838
        %v1871 = vsel %vm1807, %v1775, %v1839
        %v1872 = vsel %vm1808, %v1776, %v1840
        %v1873 = vsel %vm1809, %v1777, %v1841
        %v1874 = vsel %vm1810, %v1778, %v1842
        %v1875 = vsel %vm1811, %v1779, %v1843
        %v1876 = vsel %vm1812, %v1780, %v1844
        %v1877 = vsel %vm1813, %v1781, %v1845
        %v1878 = vsel %vm1814, %v1782, %v1846
        %1879 = vst [vmem:[%s284] sm:$0xff] %v1847
        %1880 = vst [vmem:[%s284 + $0x8] sm:$0xff] %v1855
        %1881 = vst [vmem:[%s284 + $0x10] sm:$0xff] %v1863
        %1882 = vst [vmem:[%s284 + $0x18] sm:$0xff] %v1871
        %s1883 = scalar_lea.vmem %s284, 32 [#allocation7]
        %1884 = vst [vmem:[%s1883] sm:$0xff] %v1848
        %1885 = vst [vmem:[%s1883 + $0x8] sm:$0xff] %v1856
        %1886 = vst [vmem:[%s1883 + $0x10] sm:$0xff] %v1864
        %1887 = vst [vmem:[%s1883 + $0x18] sm:$0xff] %v1872
        %s1888 = scalar_lea.vmem %s284, 64 [#allocation7]
        %1889 = vst [vmem:[%s1888] sm:$0xff] %v1849
        %1890 = vst [vmem:[%s1888 + $0x8] sm:$0xff] %v1857
        %1891 = vst [vmem:[%s1888 + $0x10] sm:$0xff] %v1865
        %1892 = vst [vmem:[%s1888 + $0x18] sm:$0xff] %v1873
        %s1893 = scalar_lea.vmem %s284, 96 [#allocation7]
        %1894 = vst [vmem:[%s1893] sm:$0xff] %v1850
        %1895 = vst [vmem:[%s1893 + $0x8] sm:$0xff] %v1858
        %1896 = vst [vmem:[%s1893 + $0x10] sm:$0xff] %v1866
        %1897 = vst [vmem:[%s1893 + $0x18] sm:$0xff] %v1874
        %s1898 = scalar_lea.vmem %s284, 128 [#allocation7]
        %1899 = vst [vmem:[%s1898] sm:$0xff] %v1851
        %1900 = vst [vmem:[%s1898 + $0x8] sm:$0xff] %v1859
        %1901 = vst [vmem:[%s1898 + $0x10] sm:$0xff] %v1867
        %1902 = vst [vmem:[%s1898 + $0x18] sm:$0xff] %v1875
        %s1903 = scalar_lea.vmem %s284, 160 [#allocation7]
        %1904 = vst [vmem:[%s1903] sm:$0xff] %v1852
        %1905 = vst [vmem:[%s1903 + $0x8] sm:$0xff] %v1860
        %1906 = vst [vmem:[%s1903 + $0x10] sm:$0xff] %v1868
        %1907 = vst [vmem:[%s1903 + $0x18] sm:$0xff] %v1876
        %s1908 = scalar_lea.vmem %s284, 192 [#allocation7]
        %1909 = vst [vmem:[%s1908] sm:$0xff] %v1853
        %1910 = vst [vmem:[%s1908 + $0x8] sm:$0xff] %v1861
        %1911 = vst [vmem:[%s1908 + $0x10] sm:$0xff] %v1869
        %1912 = vst [vmem:[%s1908 + $0x18] sm:$0xff] %v1877
        %s1913 = scalar_lea.vmem %s284, 224 [#allocation7]
        %1914 = vst [vmem:[%s1913] sm:$0xff] %v1854
        %1915 = vst [vmem:[%s1913 + $0x8] sm:$0xff] %v1862
        %1916 = vst [vmem:[%s1913 + $0x10] sm:$0xff] %v1870
        %1917 = vst [vmem:[%s1913 + $0x18] sm:$0xff] %v1878
        %s1918 = sand.u32 %s163, 1
        %s1919 = scalar_lea.sflag [#allocation4], %s1918
        %s1920 = sand.u32 %s163, 1
        %s1921 = smul.addr %s1920, 256
        %s1922 = scalar_lea.vmem [#allocation7], %s1921
        // Predicated region
        $region53: #{tpu_custom_call.1} parent=43 // pred_check
          %p1923 = pneg %p173
        $region54: #{tpu_custom_call.1} parent=43 // pred_check_branch
          %1925 = sbr.rel (%p1923) target = $region56
        $region55: #{tpu_custom_call.1} parent=43 // pred_region
          %s1927 = ssub.s32 4096, 4096
          %1928 = vsyncadd %s1919, %s1927
          %s1929 = smul.addr %s24, 32
          %s1930 = smul.addr %s1929, 128
          %s1931 = scalar_lea.hbm %s6, %s1930
          %s1932 = sshll.u32 %s1922, 4
          %s1933 = int_to_ptr.vmem [resolvable:$true] %s1932
          %1938 = dma.vmem_to_hbm [thread:$0]  %s1933, 4096, %s1931, %s1919, 128, 128, 8
        $region56: #{tpu_custom_call.1} parent=43 // pred_fallthru
          _
      $region44: #{tpu_custom_call.1} parent=5 // pred_fallthru
        _
      %p1939 = scmp.le.s32.totalorder 2, %s19
      // Predicated region
      $region57: #{tpu_custom_call.1} parent=5 // pred_check
        %p1940 = pneg %p1939
      $region58: #{tpu_custom_call.1} parent=5 // pred_check_branch
        %1942 = sbr.rel (%p1940) target = $region60
      $region59: #{tpu_custom_call.1} parent=5 // pred_region
        %s1943 = ssub.s32 %s19, 2
        // Predicated region
        $region61: #{tpu_custom_call.1} parent=59 // pred_check
          %p1944 = pneg %p179
        $region62: #{tpu_custom_call.1} parent=59 // pred_check_branch
          %1946 = sbr.rel (%p1944) target = $region64
        $region63: #{tpu_custom_call.1} parent=59 // pred_region
          %s1947 = sand.u32 %s164, 1
          %s1948 = scalar_lea.sflag [#allocation4], %s1947
          %s1949 = sand.u32 %s164, 1
          %s1950 = smul.addr %s1949, 256
          %s1951 = scalar_lea.vmem [#allocation7], %s1950
          %1952 = dma.done %s1948, 4096
        $region64: #{tpu_custom_call.1} parent=59 // pred_fallthru
          _
      $region60: #{tpu_custom_call.1} parent=5 // pred_fallthru
        _
    $region6: #{tpu_custom_call.1} parent=1 // loop_footer
      %s23 = sadd.s32 1, %s19
    $region7: #{tpu_custom_call.1} parent=1 // loop_footer_branch
      %18 = sbr.rel target = $region3
    $region8: #{tpu_custom_call.1} parent=1 // loop_exit
      _
    %1953 = vsyncpa [#allocation3], 1
    %s1954 = scalar_lea.sflag [#allocation3], 1
    %1955 = vsyncpa %s1954, 1
    %1956 = vsyncpa [#allocation6], 1
    %1957 = vsyncpa [#allocation4], 1
    %s1958 = scalar_lea.sflag [#allocation4], 1
    %1959 = vsyncpa %s1958, 1

</llo_original>
